<compile_context>
chip_gen: v7x
topology: tpu7x:2x2x1
jax: 0.10.0
libtpu: 0.0.40
codegen_flags: <defaults>
</compile_context>

<pallas_src>
import jax
import jax.numpy as jnp
from jax import lax
from jax.experimental import pallas as pl
from jax.experimental.pallas import tpu as pltpu
import numpy as np

HIDDEN = 128
IN_DIM = 32 * 3      # 96
NUM_LAYERS = 3
OUT_DIM = 11
PAD_OUT = 128        # lane-dense padded fc output width


def rnn_net_kernel(x0_ref,                 # (BP, TC, H)  layer-0 pre-projection (x@Wih0 + b0)
                   whh0_ref,               # (H, H)       layer-0 recurrent weight
                   w1_ref, w2_ref,         # (2H, H)      fused [Wih; Whh] for layers 1, 2
                   b1_ref, b2_ref,         # (1, H)       combined biases for layers 1, 2
                   wfc_ref, bfc_ref,       # (H, PAD_OUT), (1, PAD_OUT)
                   out_ref,                # (BP, PAD_OUT)
                   h0_s, h1_s, h2_s):      # (BP, H) f32 scratch, persists across grid steps
    tblk = pl.program_id(0)
    BP = h0_s.shape[0]

    # h0 = zeros(layer_dim, B, H)  (PyTorch h0.detach()) -- init once at the first time chunk.
    @pl.when(tblk == 0)
    def _init():
        h0_s[...] = jnp.zeros_like(h0_s)
        h1_s[...] = jnp.zeros_like(h1_s)
        h2_s[...] = jnp.zeros_like(h2_s)

    # Hoist weight / bias loads and bias broadcasts out of the unrolled time loop.
    whh0 = whh0_ref[...]
    w1 = w1_ref[...]
    w2 = w2_ref[...]
    cdt = whh0.dtype                       # matmul-input dtype (f32 or bf16)
    b1 = jnp.broadcast_to(b1_ref[...], (BP, HIDDEN))
    b2 = jnp.broadcast_to(b2_ref[...], (BP, HIDDEN))

    h0 = h0_s[...]
    h1 = h1_s[...]
    h2 = h2_s[...]

    tc = x0_ref.shape[1]
    # Fully unrolled time loop (tc is a small static block size): static slices of x0,
    # hidden state carried in vregs, written back to scratch once per chunk.
    for t in range(tc):
        x0t = x0_ref[:, t, :]                                        # (BP, H), f32
        # layer 0: relu(X0[t] + h0 @ W_hh0)
        h0 = jnp.maximum(
            x0t + jnp.dot(h0.astype(cdt), whh0,
                          preferred_element_type=jnp.float32), 0.0)
        # layer 1: relu([h0 | h1_prev] @ [Wih1; Whh1] + (b_ih1+b_hh1))  -- one K=256 matmul
        h1 = jnp.maximum(
            jnp.dot(jnp.concatenate([h0, h1], axis=1).astype(cdt), w1,
                    preferred_element_type=jnp.float32) + b1, 0.0)
        # layer 2
        h2 = jnp.maximum(
            jnp.dot(jnp.concatenate([h1, h2], axis=1).astype(cdt), w2,
                    preferred_element_type=jnp.float32) + b2, 0.0)

    h0_s[...] = h0
    h1_s[...] = h1
    h2_s[...] = h2

    # fc(out[:, -1, :]) == fc(last hidden state of the top layer); lane-dense padded store.
    @pl.when(tblk == pl.num_programs(0) - 1)
    def _finalize():
        out_ref[...] = (jnp.dot(h2.astype(cdt), wfc_ref[...],
                                preferred_element_type=jnp.float32)
                        + bfc_ref[...])


def prepare_kernel_params(params, compute_dtype=jnp.float32):
    """Fuse / pad the raw (pre-transposed, (in,out)-layout) params for the kernel."""
    wih, whh = params["wih"], params["whh"]
    b = params["bih"] + params["bhh"]                        # (3, H) combined biases
    w1s = jnp.concatenate([wih[1], whh[1]], axis=0).astype(compute_dtype)   # (2H, H)
    w2s = jnp.concatenate([wih[2], whh[2]], axis=0).astype(compute_dtype)   # (2H, H)
    wfc_pad = (jnp.zeros((HIDDEN, PAD_OUT), jnp.float32)
               .at[:, :OUT_DIM].set(params["wfc"])).astype(compute_dtype)
    bfc_pad = jnp.zeros((1, PAD_OUT), jnp.float32).at[:, :OUT_DIM].set(params["bfc"])
    return dict(
        wih0=wih[0].astype(compute_dtype),                   # (IN, H)
        whh0=whh[0].astype(compute_dtype),                   # (H, H)
        w1s=w1s, w2s=w2s,
        b0=b[0:1], b1=b[1:2], b2=b[2:3],                     # (1, H) each, f32
        wfc=wfc_pad, bfc=bfc_pad)


def _pick_time_chunk(T):
    # Largest multiple-of-8 divisor of T up to 128; else the full T (block == full dim).
    for cand in (128, 64, 32, 16, 8):
        if T % cand == 0:
            return cand
    return T


def rnn_net_forward(x_btf, params, *, compute_dtype=jnp.float32, time_chunk=None):
    """x_btf: (B, T, 96) float32, batch_first like the PyTorch module. Returns (B, 11)."""
    B, T, F = x_btf.shape
    assert F == IN_DIM
    kp = prepare_kernel_params(params, compute_dtype)

    # Pad batch to the f32 sublane tile (rows are independent; sliced off at the end).
    BP = max(8, ((B + 7) // 8) * 8)
    if BP != B:
        x_btf = jnp.pad(x_btf, ((0, BP - B), (0, 0), (0, 0)))

    # Hoisted layer-0 input projection: one large matmul instead of T tiny ones.
    x0 = (jnp.dot(x_btf.reshape(BP * T, IN_DIM).astype(compute_dtype), kp["wih0"],
                  preferred_element_type=jnp.float32)
          + kp["b0"]).reshape(BP, T, HIDDEN)                 # (BP, T, H), f32, batch-first

    tc = _pick_time_chunk(T) if time_chunk is None else time_chunk
    assert T % tc == 0
    grid = (T // tc,)

    out_pad = pl.pallas_call(
        rnn_net_kernel,
        out_shape=jax.ShapeDtypeStruct((BP, PAD_OUT), jnp.float32),
        grid_spec=pltpu.PrefetchScalarGridSpec(
            num_scalar_prefetch=0,
            grid=grid,
            in_specs=[
                pl.BlockSpec((BP, tc, HIDDEN), lambda t: (0, t, 0)),   # x0 time-chunked
                pl.BlockSpec((HIDDEN, HIDDEN), lambda t: (0, 0)),      # whh0
                pl.BlockSpec((2 * HIDDEN, HIDDEN), lambda t: (0, 0)),  # fused W1
                pl.BlockSpec((2 * HIDDEN, HIDDEN), lambda t: (0, 0)),  # fused W2
                pl.BlockSpec((1, HIDDEN), lambda t: (0, 0)),           # b1
                pl.BlockSpec((1, HIDDEN), lambda t: (0, 0)),           # b2
                pl.BlockSpec((HIDDEN, PAD_OUT), lambda t: (0, 0)),     # wfc (padded)
                pl.BlockSpec((1, PAD_OUT), lambda t: (0, 0)),          # bfc (padded)
            ],
            out_specs=pl.BlockSpec((BP, PAD_OUT), lambda t: (0, 0)),
            scratch_shapes=[pltpu.VMEM((BP, HIDDEN), jnp.float32)] * NUM_LAYERS,
        ),
        compiler_params=pltpu.CompilerParams(
            dimension_semantics=("arbitrary",)),   # recurrence over time: sequential
    )(x0, kp["whh0"], kp["w1s"], kp["w2s"], kp["b1"], kp["b2"], kp["wfc"], kp["bfc"])

    return out_pad[:B, :OUT_DIM]


def init_params(key):
    """Deterministic init matching PyTorch nn.RNN/Linear shapes.
       Weights stored transposed: (in_features, out_features)."""
    k = 1.0 / jnp.sqrt(HIDDEN)
    keys = jax.random.split(key, 16)
    ki = iter(keys)
    wih = [
        jax.random.uniform(next(ki), (IN_DIM, HIDDEN), jnp.float32, -k, k),
        jax.random.uniform(next(ki), (HIDDEN, HIDDEN), jnp.float32, -k, k),
        jax.random.uniform(next(ki), (HIDDEN, HIDDEN), jnp.float32, -k, k),
    ]
    whh = [jax.random.uniform(next(ki), (HIDDEN, HIDDEN), jnp.float32, -k, k)
           for _ in range(NUM_LAYERS)]
    bih = jax.random.uniform(next(ki), (NUM_LAYERS, HIDDEN), jnp.float32, -k, k)
    bhh = jax.random.uniform(next(ki), (NUM_LAYERS, HIDDEN), jnp.float32, -k, k)
    kf = 1.0 / jnp.sqrt(HIDDEN)
    wfc = jax.random.uniform(next(ki), (HIDDEN, OUT_DIM), jnp.float32, -kf, kf)
    bfc = jax.random.uniform(next(ki), (1, OUT_DIM), jnp.float32, -kf, kf)
    return dict(wih=wih, whh=whh, bih=bih, bhh=bhh, wfc=wfc, bfc=bfc)


def rnn_net_reference(x_btf, params):
    """Pure-JAX reference of the PyTorch forward (unfused, f32)."""
    B, T, _ = x_btf.shape
    h = [jnp.zeros((B, HIDDEN), jnp.float32) for _ in range(NUM_LAYERS)]
    for t in range(T):
        inp = x_btf[:, t, :]
        for l in range(NUM_LAYERS):
            h[l] = jax.nn.relu(inp @ params["wih"][l] + params["bih"][l]
                               + h[l] @ params["whh"][l] + params["bhh"][l])
            inp = h[l]
    return h[-1] @ params["wfc"] + params["bfc"]


if __name__ == "__main__":
    key = jax.random.PRNGKey(0)
    pkey, xkey = jax.random.split(key)
    params = init_params(pkey)

    B, T = 2, 8
    x = jax.random.normal(xkey, (B, T, IN_DIM), jnp.float32)

    out = rnn_net_forward(x, params)   # f32 path (pass compute_dtype=jnp.bfloat16 on v6e/v7x)
    out = jax.block_until_ready(out)

    ref = rnn_net_reference(x, params)
    assert out.shape == (B, OUT_DIM)
    np.testing.assert_allclose(np.asarray(out), np.asarray(ref),
                               rtol=1e-3, atol=1e-3)
    print("KERNEL_OK")
</pallas_src>

<mosaic_0001>
module attributes {stable_mosaic.version = 11 : i64} {
  func.func @rnn_net_kernel(%arg0: i32, %arg1: memref<8x8x128xf32, #tpu.memory_space<vmem>>, %arg2: memref<128x128xf32, #tpu.memory_space<vmem>>, %arg3: memref<256x128xf32, #tpu.memory_space<vmem>>, %arg4: memref<256x128xf32, #tpu.memory_space<vmem>>, %arg5: memref<1x128xf32, #tpu.memory_space<vmem>>, %arg6: memref<1x128xf32, #tpu.memory_space<vmem>>, %arg7: memref<128x128xf32, #tpu.memory_space<vmem>>, %arg8: memref<1x128xf32, #tpu.memory_space<vmem>>, %arg9: memref<8x128xf32, #tpu.memory_space<vmem>>, %arg10: memref<8x128xf32, #tpu.memory_space<vmem>>, %arg11: memref<8x128xf32, #tpu.memory_space<vmem>>, %arg12: memref<8x128xf32, #tpu.memory_space<vmem>>) attributes {dimension_semantics = [#tpu.dimension_semantics<arbitrary>], iteration_bounds = array<i64: 1>, scalar_prefetch = 0 : i64, scratch_operands = 3 : i64, tpu.core_type = #tpu.core_type<tc>, window_params = [{transform_indices = @transform_0, window_bounds = array<i64: 8, 8, 128>}, {pipeline_mode = #tpu.pipeline_mode<synchronous>, transform_indices = @transform_1, window_bounds = array<i64: 128, 128>}, {pipeline_mode = #tpu.pipeline_mode<synchronous>, transform_indices = @transform_2, window_bounds = array<i64: 256, 128>}, {pipeline_mode = #tpu.pipeline_mode<synchronous>, transform_indices = @transform_3, window_bounds = array<i64: 256, 128>}, {pipeline_mode = #tpu.pipeline_mode<synchronous>, transform_indices = @transform_4, window_bounds = array<i64: 1, 128>}, {pipeline_mode = #tpu.pipeline_mode<synchronous>, transform_indices = @transform_5, window_bounds = array<i64: 1, 128>}, {pipeline_mode = #tpu.pipeline_mode<synchronous>, transform_indices = @transform_6, window_bounds = array<i64: 128, 128>}, {pipeline_mode = #tpu.pipeline_mode<synchronous>, transform_indices = @transform_7, window_bounds = array<i64: 1, 128>}, {pipeline_mode = #tpu.pipeline_mode<synchronous>, transform_indices = @transform_8, window_bounds = array<i64: 8, 128>}]} {
    %c0_i32 = arith.constant 0 : i32
    %0 = arith.cmpi eq, %arg0, %c0_i32 : i32
    %1 = arith.extui %0 : i1 to i32
    %c0_i32_0 = arith.constant 0 : i32
    %2 = arith.cmpi ne, %1, %c0_i32_0 : i32
    scf.if %2 {
      %cst_88 = arith.constant 0.000000e+00 : f32
      %149 = vector.broadcast %cst_88 : f32 to vector<8x128xf32>
      %c0_89 = arith.constant 0 : index
      %c0_90 = arith.constant 0 : index
      %150 = vector.load %arg10[%c0_89, %c0_90] : memref<8x128xf32, #tpu.memory_space<vmem>>, vector<8x128xf32>
      tpu.vector_store %arg10[%c0_89, %c0_90], %149 {strides = array<i32>} : memref<8x128xf32, #tpu.memory_space<vmem>>, vector<8x128xf32>,
      %cst_91 = arith.constant 0.000000e+00 : f32
      %151 = vector.broadcast %cst_91 : f32 to vector<8x128xf32>
      %c0_92 = arith.constant 0 : index
      %c0_93 = arith.constant 0 : index
      %152 = vector.load %arg11[%c0_92, %c0_93] : memref<8x128xf32, #tpu.memory_space<vmem>>, vector<8x128xf32>
      tpu.vector_store %arg11[%c0_92, %c0_93], %151 {strides = array<i32>} : memref<8x128xf32, #tpu.memory_space<vmem>>, vector<8x128xf32>,
      %cst_94 = arith.constant 0.000000e+00 : f32
      %153 = vector.broadcast %cst_94 : f32 to vector<8x128xf32>
      %c0_95 = arith.constant 0 : index
      %c0_96 = arith.constant 0 : index
      %154 = vector.load %arg12[%c0_95, %c0_96] : memref<8x128xf32, #tpu.memory_space<vmem>>, vector<8x128xf32>
      tpu.vector_store %arg12[%c0_95, %c0_96], %153 {strides = array<i32>} : memref<8x128xf32, #tpu.memory_space<vmem>>, vector<8x128xf32>,
    } else {
    }
    %c0 = arith.constant 0 : index
    %c0_1 = arith.constant 0 : index
    %3 = vector.load %arg2[%c0, %c0_1] : memref<128x128xf32, #tpu.memory_space<vmem>>, vector<128x128xf32>
    %c0_2 = arith.constant 0 : index
    %c0_3 = arith.constant 0 : index
    %4 = vector.load %arg3[%c0_2, %c0_3] : memref<256x128xf32, #tpu.memory_space<vmem>>, vector<256x128xf32>
    %c0_4 = arith.constant 0 : index
    %c0_5 = arith.constant 0 : index
    %5 = vector.load %arg4[%c0_4, %c0_5] : memref<256x128xf32, #tpu.memory_space<vmem>>, vector<256x128xf32>
    %c0_6 = arith.constant 0 : index
    %c0_7 = arith.constant 0 : index
    %6 = vector.load %arg5[%c0_6, %c0_7] : memref<1x128xf32, #tpu.memory_space<vmem>>, vector<1x128xf32>
    %7 = vector.shape_cast %6 : vector<1x128xf32> to vector<1x128xf32>
    %8 = vector.broadcast %7 : vector<1x128xf32> to vector<8x128xf32>
    %c0_8 = arith.constant 0 : index
    %c0_9 = arith.constant 0 : index
    %9 = vector.load %arg6[%c0_8, %c0_9] : memref<1x128xf32, #tpu.memory_space<vmem>>, vector<1x128xf32>
    %10 = vector.shape_cast %9 : vector<1x128xf32> to vector<1x128xf32>
    %11 = vector.broadcast %10 : vector<1x128xf32> to vector<8x128xf32>
    %c0_10 = arith.constant 0 : index
    %c0_11 = arith.constant 0 : index
    %12 = vector.load %arg10[%c0_10, %c0_11] : memref<8x128xf32, #tpu.memory_space<vmem>>, vector<8x128xf32>
    %c0_12 = arith.constant 0 : index
    %c0_13 = arith.constant 0 : index
    %13 = vector.load %arg11[%c0_12, %c0_13] : memref<8x128xf32, #tpu.memory_space<vmem>>, vector<8x128xf32>
    %c0_14 = arith.constant 0 : index
    %c0_15 = arith.constant 0 : index
    %14 = vector.load %arg12[%c0_14, %c0_15] : memref<8x128xf32, #tpu.memory_space<vmem>>, vector<8x128xf32>
    %c0_16 = arith.constant 0 : index
    %c0_17 = arith.constant 0 : index
    %c0_18 = arith.constant 0 : index
    %15 = vector.load %arg1[%c0_16, %c0_17, %c0_18] : memref<8x8x128xf32, #tpu.memory_space<vmem>>, vector<8x1x128xf32>
    %16 = vector.shape_cast %15 : vector<8x1x128xf32> to vector<8x128xf32>
    %cst = arith.constant dense<0.000000e+00> : vector<8x128xf32>
    %17 = tpu.matmul %12, %3, %cst {dimension_numbers = #tpu.dot_dimension_numbers<[1], [0], [0], [1], [0, 0, 1, 1], [], []>} : vector<8x128xf32>, vector<128x128xf32>, vector<8x128xf32> -> vector<8x128xf32>
    %18 = arith.addf %16, %17 : vector<8x128xf32>
    %cst_19 = arith.constant 0.000000e+00 : f32
    %19 = vector.broadcast %cst_19 : f32 to vector<8x128xf32>
    %20 = arith.maximumf %18, %19 : vector<8x128xf32>
    %21 = tpu.concatenate %20, %13 in 1 : vector<8x128xf32>, vector<8x128xf32> -> vector<8x256xf32>
    %cst_20 = arith.constant dense<0.000000e+00> : vector<8x128xf32>
    %22 = tpu.matmul %21, %4, %cst_20 {dimension_numbers = #tpu.dot_dimension_numbers<[1], [0], [0], [1], [0, 0, 1, 1], [], []>} : vector<8x256xf32>, vector<256x128xf32>, vector<8x128xf32> -> vector<8x128xf32>
    %23 = arith.addf %22, %8 : vector<8x128xf32>
    %cst_21 = arith.constant 0.000000e+00 : f32
    %24 = vector.broadcast %cst_21 : f32 to vector<8x128xf32>
    %25 = arith.maximumf %23, %24 : vector<8x128xf32>
    %26 = tpu.concatenate %25, %14 in 1 : vector<8x128xf32>, vector<8x128xf32> -> vector<8x256xf32>
    %cst_22 = arith.constant dense<0.000000e+00> : vector<8x128xf32>
    %27 = tpu.matmul %26, %5, %cst_22 {dimension_numbers = #tpu.dot_dimension_numbers<[1], [0], [0], [1], [0, 0, 1, 1], [], []>} : vector<8x256xf32>, vector<256x128xf32>, vector<8x128xf32> -> vector<8x128xf32>
    %28 = arith.addf %27, %11 : vector<8x128xf32>
    %cst_23 = arith.constant 0.000000e+00 : f32
    %29 = vector.broadcast %cst_23 : f32 to vector<8x128xf32>
    %30 = arith.maximumf %28, %29 : vector<8x128xf32>
    %c0_24 = arith.constant 0 : index
    %c1 = arith.constant 1 : index
    %c0_25 = arith.constant 0 : index
    %31 = vector.load %arg1[%c0_24, %c1, %c0_25] : memref<8x8x128xf32, #tpu.memory_space<vmem>>, vector<8x1x128xf32>
    %32 = vector.shape_cast %31 : vector<8x1x128xf32> to vector<8x128xf32>
    %cst_26 = arith.constant dense<0.000000e+00> : vector<8x128xf32>
    %33 = tpu.matmul %20, %3, %cst_26 {dimension_numbers = #tpu.dot_dimension_numbers<[1], [0], [0], [1], [0, 0, 1, 1], [], []>} : vector<8x128xf32>, vector<128x128xf32>, vector<8x128xf32> -> vector<8x128xf32>
    %34 = arith.addf %32, %33 : vector<8x128xf32>
    %cst_27 = arith.constant 0.000000e+00 : f32
    %35 = vector.broadcast %cst_27 : f32 to vector<8x128xf32>
    %36 = arith.maximumf %34, %35 : vector<8x128xf32>
    %37 = tpu.concatenate %36, %25 in 1 : vector<8x128xf32>, vector<8x128xf32> -> vector<8x256xf32>
    %cst_28 = arith.constant dense<0.000000e+00> : vector<8x128xf32>
    %38 = tpu.matmul %37, %4, %cst_28 {dimension_numbers = #tpu.dot_dimension_numbers<[1], [0], [0], [1], [0, 0, 1, 1], [], []>} : vector<8x256xf32>, vector<256x128xf32>, vector<8x128xf32> -> vector<8x128xf32>
    %39 = arith.addf %38, %8 : vector<8x128xf32>
    %cst_29 = arith.constant 0.000000e+00 : f32
    %40 = vector.broadcast %cst_29 : f32 to vector<8x128xf32>
    %41 = arith.maximumf %39, %40 : vector<8x128xf32>
    %42 = tpu.concatenate %41, %30 in 1 : vector<8x128xf32>, vector<8x128xf32> -> vector<8x256xf32>
    %cst_30 = arith.constant dense<0.000000e+00> : vector<8x128xf32>
    %43 = tpu.matmul %42, %5, %cst_30 {dimension_numbers = #tpu.dot_dimension_numbers<[1], [0], [0], [1], [0, 0, 1, 1], [], []>} : vector<8x256xf32>, vector<256x128xf32>, vector<8x128xf32> -> vector<8x128xf32>
    %44 = arith.addf %43, %11 : vector<8x128xf32>
    %cst_31 = arith.constant 0.000000e+00 : f32
    %45 = vector.broadcast %cst_31 : f32 to vector<8x128xf32>
    %46 = arith.maximumf %44, %45 : vector<8x128xf32>
    %c0_32 = arith.constant 0 : index
    %c2 = arith.constant 2 : index
    %c0_33 = arith.constant 0 : index
    %47 = vector.load %arg1[%c0_32, %c2, %c0_33] : memref<8x8x128xf32, #tpu.memory_space<vmem>>, vector<8x1x128xf32>
    %48 = vector.shape_cast %47 : vector<8x1x128xf32> to vector<8x128xf32>
    %cst_34 = arith.constant dense<0.000000e+00> : vector<8x128xf32>
    %49 = tpu.matmul %36, %3, %cst_34 {dimension_numbers = #tpu.dot_dimension_numbers<[1], [0], [0], [1], [0, 0, 1, 1], [], []>} : vector<8x128xf32>, vector<128x128xf32>, vector<8x128xf32> -> vector<8x128xf32>
    %50 = arith.addf %48, %49 : vector<8x128xf32>
    %cst_35 = arith.constant 0.000000e+00 : f32
    %51 = vector.broadcast %cst_35 : f32 to vector<8x128xf32>
    %52 = arith.maximumf %50, %51 : vector<8x128xf32>
    %53 = tpu.concatenate %52, %41 in 1 : vector<8x128xf32>, vector<8x128xf32> -> vector<8x256xf32>
    %cst_36 = arith.constant dense<0.000000e+00> : vector<8x128xf32>
    %54 = tpu.matmul %53, %4, %cst_36 {dimension_numbers = #tpu.dot_dimension_numbers<[1], [0], [0], [1], [0, 0, 1, 1], [], []>} : vector<8x256xf32>, vector<256x128xf32>, vector<8x128xf32> -> vector<8x128xf32>
    %55 = arith.addf %54, %8 : vector<8x128xf32>
    %cst_37 = arith.constant 0.000000e+00 : f32
    %56 = vector.broadcast %cst_37 : f32 to vector<8x128xf32>
    %57 = arith.maximumf %55, %56 : vector<8x128xf32>
    %58 = tpu.concatenate %57, %46 in 1 : vector<8x128xf32>, vector<8x128xf32> -> vector<8x256xf32>
    %cst_38 = arith.constant dense<0.000000e+00> : vector<8x128xf32>
    %59 = tpu.matmul %58, %5, %cst_38 {dimension_numbers = #tpu.dot_dimension_numbers<[1], [0], [0], [1], [0, 0, 1, 1], [], []>} : vector<8x256xf32>, vector<256x128xf32>, vector<8x128xf32> -> vector<8x128xf32>
    %60 = arith.addf %59, %11 : vector<8x128xf32>
    %cst_39 = arith.constant 0.000000e+00 : f32
    %61 = vector.broadcast %cst_39 : f32 to vector<8x128xf32>
    %62 = arith.maximumf %60, %61 : vector<8x128xf32>
    %c0_40 = arith.constant 0 : index
    %c3 = arith.constant 3 : index
    %c0_41 = arith.constant 0 : index
    %63 = vector.load %arg1[%c0_40, %c3, %c0_41] : memref<8x8x128xf32, #tpu.memory_space<vmem>>, vector<8x1x128xf32>
    %64 = vector.shape_cast %63 : vector<8x1x128xf32> to vector<8x128xf32>
    %cst_42 = arith.constant dense<0.000000e+00> : vector<8x128xf32>
    %65 = tpu.matmul %52, %3, %cst_42 {dimension_numbers = #tpu.dot_dimension_numbers<[1], [0], [0], [1], [0, 0, 1, 1], [], []>} : vector<8x128xf32>, vector<128x128xf32>, vector<8x128xf32> -> vector<8x128xf32>
    %66 = arith.addf %64, %65 : vector<8x128xf32>
    %cst_43 = arith.constant 0.000000e+00 : f32
    %67 = vector.broadcast %cst_43 : f32 to vector<8x128xf32>
    %68 = arith.maximumf %66, %67 : vector<8x128xf32>
    %69 = tpu.concatenate %68, %57 in 1 : vector<8x128xf32>, vector<8x128xf32> -> vector<8x256xf32>
    %cst_44 = arith.constant dense<0.000000e+00> : vector<8x128xf32>
    %70 = tpu.matmul %69, %4, %cst_44 {dimension_numbers = #tpu.dot_dimension_numbers<[1], [0], [0], [1], [0, 0, 1, 1], [], []>} : vector<8x256xf32>, vector<256x128xf32>, vector<8x128xf32> -> vector<8x128xf32>
    %71 = arith.addf %70, %8 : vector<8x128xf32>
    %cst_45 = arith.constant 0.000000e+00 : f32
    %72 = vector.broadcast %cst_45 : f32 to vector<8x128xf32>
    %73 = arith.maximumf %71, %72 : vector<8x128xf32>
    %74 = tpu.concatenate %73, %62 in 1 : vector<8x128xf32>, vector<8x128xf32> -> vector<8x256xf32>
    %cst_46 = arith.constant dense<0.000000e+00> : vector<8x128xf32>
    %75 = tpu.matmul %74, %5, %cst_46 {dimension_numbers = #tpu.dot_dimension_numbers<[1], [0], [0], [1], [0, 0, 1, 1], [], []>} : vector<8x256xf32>, vector<256x128xf32>, vector<8x128xf32> -> vector<8x128xf32>
    %76 = arith.addf %75, %11 : vector<8x128xf32>
    %cst_47 = arith.constant 0.000000e+00 : f32
    %77 = vector.broadcast %cst_47 : f32 to vector<8x128xf32>
    %78 = arith.maximumf %76, %77 : vector<8x128xf32>
    %c0_48 = arith.constant 0 : index
    %c4 = arith.constant 4 : index
    %c0_49 = arith.constant 0 : index
    %79 = vector.load %arg1[%c0_48, %c4, %c0_49] : memref<8x8x128xf32, #tpu.memory_space<vmem>>, vector<8x1x128xf32>
    %80 = vector.shape_cast %79 : vector<8x1x128xf32> to vector<8x128xf32>
    %cst_50 = arith.constant dense<0.000000e+00> : vector<8x128xf32>
    %81 = tpu.matmul %68, %3, %cst_50 {dimension_numbers = #tpu.dot_dimension_numbers<[1], [0], [0], [1], [0, 0, 1, 1], [], []>} : vector<8x128xf32>, vector<128x128xf32>, vector<8x128xf32> -> vector<8x128xf32>
    %82 = arith.addf %80, %81 : vector<8x128xf32>
    %cst_51 = arith.constant 0.000000e+00 : f32
    %83 = vector.broadcast %cst_51 : f32 to vector<8x128xf32>
    %84 = arith.maximumf %82, %83 : vector<8x128xf32>
    %85 = tpu.concatenate %84, %73 in 1 : vector<8x128xf32>, vector<8x128xf32> -> vector<8x256xf32>
    %cst_52 = arith.constant dense<0.000000e+00> : vector<8x128xf32>
    %86 = tpu.matmul %85, %4, %cst_52 {dimension_numbers = #tpu.dot_dimension_numbers<[1], [0], [0], [1], [0, 0, 1, 1], [], []>} : vector<8x256xf32>, vector<256x128xf32>, vector<8x128xf32> -> vector<8x128xf32>
    %87 = arith.addf %86, %8 : vector<8x128xf32>
    %cst_53 = arith.constant 0.000000e+00 : f32
    %88 = vector.broadcast %cst_53 : f32 to vector<8x128xf32>
    %89 = arith.maximumf %87, %88 : vector<8x128xf32>
    %90 = tpu.concatenate %89, %78 in 1 : vector<8x128xf32>, vector<8x128xf32> -> vector<8x256xf32>
    %cst_54 = arith.constant dense<0.000000e+00> : vector<8x128xf32>
    %91 = tpu.matmul %90, %5, %cst_54 {dimension_numbers = #tpu.dot_dimension_numbers<[1], [0], [0], [1], [0, 0, 1, 1], [], []>} : vector<8x256xf32>, vector<256x128xf32>, vector<8x128xf32> -> vector<8x128xf32>
    %92 = arith.addf %91, %11 : vector<8x128xf32>
    %cst_55 = arith.constant 0.000000e+00 : f32
    %93 = vector.broadcast %cst_55 : f32 to vector<8x128xf32>
    %94 = arith.maximumf %92, %93 : vector<8x128xf32>
    %c0_56 = arith.constant 0 : index
    %c5 = arith.constant 5 : index
    %c0_57 = arith.constant 0 : index
    %95 = vector.load %arg1[%c0_56, %c5, %c0_57] : memref<8x8x128xf32, #tpu.memory_space<vmem>>, vector<8x1x128xf32>
    %96 = vector.shape_cast %95 : vector<8x1x128xf32> to vector<8x128xf32>
    %cst_58 = arith.constant dense<0.000000e+00> : vector<8x128xf32>
    %97 = tpu.matmul %84, %3, %cst_58 {dimension_numbers = #tpu.dot_dimension_numbers<[1], [0], [0], [1], [0, 0, 1, 1], [], []>} : vector<8x128xf32>, vector<128x128xf32>, vector<8x128xf32> -> vector<8x128xf32>
    %98 = arith.addf %96, %97 : vector<8x128xf32>
    %cst_59 = arith.constant 0.000000e+00 : f32
    %99 = vector.broadcast %cst_59 : f32 to vector<8x128xf32>
    %100 = arith.maximumf %98, %99 : vector<8x128xf32>
    %101 = tpu.concatenate %100, %89 in 1 : vector<8x128xf32>, vector<8x128xf32> -> vector<8x256xf32>
    %cst_60 = arith.constant dense<0.000000e+00> : vector<8x128xf32>
    %102 = tpu.matmul %101, %4, %cst_60 {dimension_numbers = #tpu.dot_dimension_numbers<[1], [0], [0], [1], [0, 0, 1, 1], [], []>} : vector<8x256xf32>, vector<256x128xf32>, vector<8x128xf32> -> vector<8x128xf32>
    %103 = arith.addf %102, %8 : vector<8x128xf32>
    %cst_61 = arith.constant 0.000000e+00 : f32
    %104 = vector.broadcast %cst_61 : f32 to vector<8x128xf32>
    %105 = arith.maximumf %103, %104 : vector<8x128xf32>
    %106 = tpu.concatenate %105, %94 in 1 : vector<8x128xf32>, vector<8x128xf32> -> vector<8x256xf32>
    %cst_62 = arith.constant dense<0.000000e+00> : vector<8x128xf32>
    %107 = tpu.matmul %106, %5, %cst_62 {dimension_numbers = #tpu.dot_dimension_numbers<[1], [0], [0], [1], [0, 0, 1, 1], [], []>} : vector<8x256xf32>, vector<256x128xf32>, vector<8x128xf32> -> vector<8x128xf32>
    %108 = arith.addf %107, %11 : vector<8x128xf32>
    %cst_63 = arith.constant 0.000000e+00 : f32
    %109 = vector.broadcast %cst_63 : f32 to vector<8x128xf32>
    %110 = arith.maximumf %108, %109 : vector<8x128xf32>
    %c0_64 = arith.constant 0 : index
    %c6 = arith.constant 6 : index
    %c0_65 = arith.constant 0 : index
    %111 = vector.load %arg1[%c0_64, %c6, %c0_65] : memref<8x8x128xf32, #tpu.memory_space<vmem>>, vector<8x1x128xf32>
    %112 = vector.shape_cast %111 : vector<8x1x128xf32> to vector<8x128xf32>
    %cst_66 = arith.constant dense<0.000000e+00> : vector<8x128xf32>
    %113 = tpu.matmul %100, %3, %cst_66 {dimension_numbers = #tpu.dot_dimension_numbers<[1], [0], [0], [1], [0, 0, 1, 1], [], []>} : vector<8x128xf32>, vector<128x128xf32>, vector<8x128xf32> -> vector<8x128xf32>
    %114 = arith.addf %112, %113 : vector<8x128xf32>
    %cst_67 = arith.constant 0.000000e+00 : f32
    %115 = vector.broadcast %cst_67 : f32 to vector<8x128xf32>
    %116 = arith.maximumf %114, %115 : vector<8x128xf32>
    %117 = tpu.concatenate %116, %105 in 1 : vector<8x128xf32>, vector<8x128xf32> -> vector<8x256xf32>
    %cst_68 = arith.constant dense<0.000000e+00> : vector<8x128xf32>
    %118 = tpu.matmul %117, %4, %cst_68 {dimension_numbers = #tpu.dot_dimension_numbers<[1], [0], [0], [1], [0, 0, 1, 1], [], []>} : vector<8x256xf32>, vector<256x128xf32>, vector<8x128xf32> -> vector<8x128xf32>
    %119 = arith.addf %118, %8 : vector<8x128xf32>
    %cst_69 = arith.constant 0.000000e+00 : f32
    %120 = vector.broadcast %cst_69 : f32 to vector<8x128xf32>
    %121 = arith.maximumf %119, %120 : vector<8x128xf32>
    %122 = tpu.concatenate %121, %110 in 1 : vector<8x128xf32>, vector<8x128xf32> -> vector<8x256xf32>
    %cst_70 = arith.constant dense<0.000000e+00> : vector<8x128xf32>
    %123 = tpu.matmul %122, %5, %cst_70 {dimension_numbers = #tpu.dot_dimension_numbers<[1], [0], [0], [1], [0, 0, 1, 1], [], []>} : vector<8x256xf32>, vector<256x128xf32>, vector<8x128xf32> -> vector<8x128xf32>
    %124 = arith.addf %123, %11 : vector<8x128xf32>
    %cst_71 = arith.constant 0.000000e+00 : f32
    %125 = vector.broadcast %cst_71 : f32 to vector<8x128xf32>
    %126 = arith.maximumf %124, %125 : vector<8x128xf32>
    %c0_72 = arith.constant 0 : index
    %c7 = arith.constant 7 : index
    %c0_73 = arith.constant 0 : index
    %127 = vector.load %arg1[%c0_72, %c7, %c0_73] : memref<8x8x128xf32, #tpu.memory_space<vmem>>, vector<8x1x128xf32>
    %128 = vector.shape_cast %127 : vector<8x1x128xf32> to vector<8x128xf32>
    %cst_74 = arith.constant dense<0.000000e+00> : vector<8x128xf32>
    %129 = tpu.matmul %116, %3, %cst_74 {dimension_numbers = #tpu.dot_dimension_numbers<[1], [0], [0], [1], [0, 0, 1, 1], [], []>} : vector<8x128xf32>, vector<128x128xf32>, vector<8x128xf32> -> vector<8x128xf32>
    %130 = arith.addf %128, %129 : vector<8x128xf32>
    %cst_75 = arith.constant 0.000000e+00 : f32
    %131 = vector.broadcast %cst_75 : f32 to vector<8x128xf32>
    %132 = arith.maximumf %130, %131 : vector<8x128xf32>
    %133 = tpu.concatenate %132, %121 in 1 : vector<8x128xf32>, vector<8x128xf32> -> vector<8x256xf32>
    %cst_76 = arith.constant dense<0.000000e+00> : vector<8x128xf32>
    %134 = tpu.matmul %133, %4, %cst_76 {dimension_numbers = #tpu.dot_dimension_numbers<[1], [0], [0], [1], [0, 0, 1, 1], [], []>} : vector<8x256xf32>, vector<256x128xf32>, vector<8x128xf32> -> vector<8x128xf32>
    %135 = arith.addf %134, %8 : vector<8x128xf32>
    %cst_77 = arith.constant 0.000000e+00 : f32
    %136 = vector.broadcast %cst_77 : f32 to vector<8x128xf32>
    %137 = arith.maximumf %135, %136 : vector<8x128xf32>
    %138 = tpu.concatenate %137, %126 in 1 : vector<8x128xf32>, vector<8x128xf32> -> vector<8x256xf32>
    %cst_78 = arith.constant dense<0.000000e+00> : vector<8x128xf32>
    %139 = tpu.matmul %138, %5, %cst_78 {dimension_numbers = #tpu.dot_dimension_numbers<[1], [0], [0], [1], [0, 0, 1, 1], [], []>} : vector<8x256xf32>, vector<256x128xf32>, vector<8x128xf32> -> vector<8x128xf32>
    %140 = arith.addf %139, %11 : vector<8x128xf32>
    %cst_79 = arith.constant 0.000000e+00 : f32
    %141 = vector.broadcast %cst_79 : f32 to vector<8x128xf32>
    %142 = arith.maximumf %140, %141 : vector<8x128xf32>
    %c0_80 = arith.constant 0 : index
    %c0_81 = arith.constant 0 : index
    %143 = vector.load %arg10[%c0_80, %c0_81] : memref<8x128xf32, #tpu.memory_space<vmem>>, vector<8x128xf32>
    tpu.vector_store %arg10[%c0_80, %c0_81], %132 {strides = array<i32>} : memref<8x128xf32, #tpu.memory_space<vmem>>, vector<8x128xf32>,
    %c0_82 = arith.constant 0 : index
    %c0_83 = arith.constant 0 : index
    %144 = vector.load %arg11[%c0_82, %c0_83] : memref<8x128xf32, #tpu.memory_space<vmem>>, vector<8x128xf32>
    tpu.vector_store %arg11[%c0_82, %c0_83], %137 {strides = array<i32>} : memref<8x128xf32, #tpu.memory_space<vmem>>, vector<8x128xf32>,
    %c0_84 = arith.constant 0 : index
    %c0_85 = arith.constant 0 : index
    %145 = vector.load %arg12[%c0_84, %c0_85] : memref<8x128xf32, #tpu.memory_space<vmem>>, vector<8x128xf32>
    tpu.vector_store %arg12[%c0_84, %c0_85], %142 {strides = array<i32>} : memref<8x128xf32, #tpu.memory_space<vmem>>, vector<8x128xf32>,
    %c0_i32_86 = arith.constant 0 : i32
    %146 = arith.cmpi eq, %arg0, %c0_i32_86 : i32
    %147 = arith.extui %146 : i1 to i32
    %c0_i32_87 = arith.constant 0 : i32
    %148 = arith.cmpi ne, %147, %c0_i32_87 : i32
    scf.if %148 {
      %c0_88 = arith.constant 0 : index
      %c0_89 = arith.constant 0 : index
      %149 = vector.load %arg7[%c0_88, %c0_89] : memref<128x128xf32, #tpu.memory_space<vmem>>, vector<128x128xf32>
      %cst_90 = arith.constant dense<0.000000e+00> : vector<8x128xf32>
      %150 = tpu.matmul %142, %149, %cst_90 {dimension_numbers = #tpu.dot_dimension_numbers<[1], [0], [0], [1], [0, 0, 1, 1], [], []>} : vector<8x128xf32>, vector<128x128xf32>, vector<8x128xf32> -> vector<8x128xf32>
      %c0_91 = arith.constant 0 : index
      %c0_92 = arith.constant 0 : index
      %151 = vector.load %arg8[%c0_91, %c0_92] : memref<1x128xf32, #tpu.memory_space<vmem>>, vector<1x128xf32>
      %152 = vector.broadcast %151 : vector<1x128xf32> to vector<8x128xf32>
      %153 = arith.addf %150, %152 : vector<8x128xf32>
      %c0_93 = arith.constant 0 : index
      %c0_94 = arith.constant 0 : index
      %154 = vector.load %arg9[%c0_93, %c0_94] : memref<8x128xf32, #tpu.memory_space<vmem>>, vector<8x128xf32>
      tpu.vector_store %arg9[%c0_93, %c0_94], %153 {strides = array<i32>} : memref<8x128xf32, #tpu.memory_space<vmem>>, vector<8x128xf32>,
    } else {
    }
    return
  }
  func.func @transform_0(%arg0: i32) -> (i32, i32, i32) {
    %c0_i32 = arith.constant 0 : i32
    %c0_i32_0 = arith.constant 0 : i32
    %c0_i32_1 = arith.constant 0 : i32
    return %c0_i32, %arg0, %c0_i32_0 : i32, i32, i32
  }
  func.func @transform_1(%arg0: i32) -> (i32, i32) {
    %c0_i32 = arith.constant 0 : i32
    %c0_i32_0 = arith.constant 0 : i32
    %c0_i32_1 = arith.constant 0 : i32
    return %c0_i32, %c0_i32_0 : i32, i32
  }
  func.func @transform_2(%arg0: i32) -> (i32, i32) {
    %c0_i32 = arith.constant 0 : i32
    %c0_i32_0 = arith.constant 0 : i32
    %c0_i32_1 = arith.constant 0 : i32
    return %c0_i32, %c0_i32_0 : i32, i32
  }
  func.func @transform_3(%arg0: i32) -> (i32, i32) {
    %c0_i32 = arith.constant 0 : i32
    %c0_i32_0 = arith.constant 0 : i32
    %c0_i32_1 = arith.constant 0 : i32
    return %c0_i32, %c0_i32_0 : i32, i32
  }
  func.func @transform_4(%arg0: i32) -> (i32, i32) {
    %c0_i32 = arith.constant 0 : i32
    %c0_i32_0 = arith.constant 0 : i32
    %c0_i32_1 = arith.constant 0 : i32
    return %c0_i32, %c0_i32_0 : i32, i32
  }
  func.func @transform_5(%arg0: i32) -> (i32, i32) {
    %c0_i32 = arith.constant 0 : i32
    %c0_i32_0 = arith.constant 0 : i32
    %c0_i32_1 = arith.constant 0 : i32
    return %c0_i32, %c0_i32_0 : i32, i32
  }
  func.func @transform_6(%arg0: i32) -> (i32, i32) {
    %c0_i32 = arith.constant 0 : i32
    %c0_i32_0 = arith.constant 0 : i32
    %c0_i32_1 = arith.constant 0 : i32
    return %c0_i32, %c0_i32_0 : i32, i32
  }
  func.func @transform_7(%arg0: i32) -> (i32, i32) {
    %c0_i32 = arith.constant 0 : i32
    %c0_i32_0 = arith.constant 0 : i32
    %c0_i32_1 = arith.constant 0 : i32
    return %c0_i32, %c0_i32_0 : i32, i32
  }
  func.func @transform_8(%arg0: i32) -> (i32, i32) {
    %c0_i32 = arith.constant 0 : i32
    %c0_i32_0 = arith.constant 0 : i32
    %c0_i32_1 = arith.constant 0 : i32
    return %c0_i32, %c0_i32_0 : i32, i32
  }
}

</mosaic_0001>

<llo_original>
// kernel: tpu_custom_call.1
$region0: #{tpu_custom_call.1}
  #allocation0 [shape = 'u32[]', space=smem, size = 0x4, offset = 0x4, fixed_abs, tag = 'smem constant byte address 0x4 - core index']
  #allocation1 [shape = 'u32[144,128]{1,0:T(1,128)}', space=vmem, size = 0x12000, scoped, tag = 'internal scratch']
  #allocation2 [shape = 'f32[8,128]{1,0:T(8,128)}', space=vmem, size = 0x1000, scoped, tag = 'scratch operand']
  #allocation3 [shape = 'f32[8,128]{1,0:T(8,128)}', space=vmem, size = 0x1000, scoped, tag = 'scratch operand']
  #allocation4 [shape = 'f32[8,128]{1,0:T(8,128)}', space=vmem, size = 0x1000, scoped, tag = 'scratch operand']
  %s0 = inlined_call_operand.hbm [shape: f32[8,8,128], index: 0, kind: input, shape index: {}]
  %s1 = inlined_call_operand.hbm [shape: f32[128,128], index: 1, kind: input, shape index: {}]
  %s2 = inlined_call_operand.hbm [shape: f32[256,128], index: 2, kind: input, shape index: {}]
  %s3 = inlined_call_operand.hbm [shape: f32[256,128], index: 3, kind: input, shape index: {}]
  %s4 = inlined_call_operand.vmem [shape: f32[1,128], index: 4, kind: input, shape index: {}]
  %s5 = inlined_call_operand.vmem [shape: f32[1,128], index: 5, kind: input, shape index: {}]
  %s6 = inlined_call_operand.hbm [shape: f32[128,128], index: 6, kind: input, shape index: {}]
  %s7 = inlined_call_operand.vmem [shape: f32[1,128], index: 7, kind: input, shape index: {}]
  %s8 = inlined_call_operand.hbm [shape: f32[8,128], index: 8, kind: output, shape index: {}]
  %s9 = sld [smem:[#allocation0]]
  $region70: #{tpu_custom_call.1} parent=0
    _
  %s11 = ssub.s32 1, %s9
  %s12 = scalar_select 0, %s11, %s9
  $region1: #{tpu_custom_call.1} parent=0
    #allocation5 [shape = 'u8[32768]{0}', space=vmem, size = 0x8000, scoped, tag = 'input window, operand 0, single buffered']
    #allocation6 [shape = 's32[1]{0}', space=sflag, size = 0x4, scoped, tag = 'scoped memory for tpu_custom_call.1']
    #allocation7 [shape = 's32[1]{0}', space=sflag, size = 0x4, scoped, tag = 'scoped memory for tpu_custom_call.1']
    #allocation8 [shape = 'u8[65536]{0}', space=vmem, size = 0x10000, scoped, tag = 'input window, operand 1, single buffered']
    #allocation9 [shape = 's32[1]{0}', space=sflag, size = 0x4, scoped, tag = 'scoped memory for tpu_custom_call.1']
    #allocation10 [shape = 'u8[131072]{0}', space=vmem, size = 0x20000, scoped, tag = 'input window, operand 2, single buffered']
    #allocation11 [shape = 'u8[131072]{0}', space=vmem, size = 0x20000, scoped, tag = 'input window, operand 3, single buffered']
    #allocation12 [shape = 's32[1]{0}', space=sflag, size = 0x4, scoped, tag = 'scoped memory for tpu_custom_call.1']
    #allocation13 [shape = 'u8[65536]{0}', space=vmem, size = 0x10000, scoped, tag = 'input window, operand 6, single buffered']
    #allocation14 [shape = 'u8[4096]{0}', space=vmem, size = 0x1000, scoped, tag = 'output window, operand 0, single buffered']
    %13 = vsyncpa [#allocation6], 0
    %14 = vsyncpa [#allocation9], 0
    %15 = vsyncpa [#allocation12], 0
    %16 = vsyncpa [#allocation7], 0
    // Predicated region
    $region2: #{tpu_custom_call.1} parent=1 // pred_check
      _
    $region3: #{tpu_custom_call.1} parent=1 // pred_check_branch
      %18 = sbr.rel (0) target = $region5
    $region4: #{tpu_custom_call.1} parent=1 // pred_region
      %s20 = ssub.s32 1024, 1024
      %21 = vsyncadd [#allocation6], %s20
      %s22 = sshll.u32 [#allocation5], 4
      %s23 = int_to_ptr.vmem [resolvable:$true] %s22
      %28 = dma.hbm_to_vmem [thread:$0]  %s0, 1024, %s23, [#allocation6], 128, 128, 8
    $region5: #{tpu_custom_call.1} parent=1 // pred_fallthru
      _
    // Predicated region
    $region6: #{tpu_custom_call.1} parent=1 // pred_check
      _
    $region7: #{tpu_custom_call.1} parent=1 // pred_check_branch
      %30 = sbr.rel (0) target = $region9
    $region8: #{tpu_custom_call.1} parent=1 // pred_region
      %s32 = ssub.s32 2048, 2048
      %33 = vsyncadd [#allocation9], %s32
      %s34 = sshll.u32 [#allocation8], 4
      %s35 = int_to_ptr.vmem [resolvable:$true] %s34
      %40 = dma.hbm_to_vmem [thread:$0]  %s1, 2048, %s35, [#allocation9], 128, 128, 8
    $region9: #{tpu_custom_call.1} parent=1 // pred_fallthru
      _
    // Predicated region
    $region10: #{tpu_custom_call.1} parent=1 // pred_check
      _
    $region11: #{tpu_custom_call.1} parent=1 // pred_check_branch
      %42 = sbr.rel (0) target = $region13
    $region12: #{tpu_custom_call.1} parent=1 // pred_region
      %s44 = ssub.s32 4096, 4096
      %45 = vsyncadd [#allocation9], %s44
      %s46 = sshll.u32 [#allocation10], 4
      %s47 = int_to_ptr.vmem [resolvable:$true] %s46
      %52 = dma.hbm_to_vmem [thread:$0]  %s2, 4096, %s47, [#allocation9], 128, 128, 8
    $region13: #{tpu_custom_call.1} parent=1 // pred_fallthru
      _
    // Predicated region
    $region14: #{tpu_custom_call.1} parent=1 // pred_check
      _
    $region15: #{tpu_custom_call.1} parent=1 // pred_check_branch
      %54 = sbr.rel (0) target = $region17
    $region16: #{tpu_custom_call.1} parent=1 // pred_region
      %s56 = ssub.s32 4096, 4096
      %57 = vsyncadd [#allocation12], %s56
      %s58 = sshll.u32 [#allocation11], 4
      %s59 = int_to_ptr.vmem [resolvable:$true] %s58
      %64 = dma.hbm_to_vmem [thread:$0]  %s3, 4096, %s59, [#allocation12], 128, 128, 8
    $region17: #{tpu_custom_call.1} parent=1 // pred_fallthru
      _
    // Predicated region
    $region18: #{tpu_custom_call.1} parent=1 // pred_check
      _
    $region19: #{tpu_custom_call.1} parent=1 // pred_check_branch
      %66 = sbr.rel (0) target = $region21
    $region20: #{tpu_custom_call.1} parent=1 // pred_region
      _
    $region21: #{tpu_custom_call.1} parent=1 // pred_fallthru
      _
    // Predicated region
    $region22: #{tpu_custom_call.1} parent=1 // pred_check
      _
    $region23: #{tpu_custom_call.1} parent=1 // pred_check_branch
      %68 = sbr.rel (0) target = $region25
    $region24: #{tpu_custom_call.1} parent=1 // pred_region
      _
    $region25: #{tpu_custom_call.1} parent=1 // pred_fallthru
      _
    // Predicated region
    $region26: #{tpu_custom_call.1} parent=1 // pred_check
      _
    $region27: #{tpu_custom_call.1} parent=1 // pred_check_branch
      %70 = sbr.rel (0) target = $region29
    $region28: #{tpu_custom_call.1} parent=1 // pred_region
      %s72 = ssub.s32 2048, 2048
      %73 = vsyncadd [#allocation12], %s72
      %s74 = sshll.u32 [#allocation13], 4
      %s75 = int_to_ptr.vmem [resolvable:$true] %s74
      %80 = dma.hbm_to_vmem [thread:$0]  %s6, 2048, %s75, [#allocation12], 128, 128, 8
    $region29: #{tpu_custom_call.1} parent=1 // pred_fallthru
      _
    // Predicated region
    $region30: #{tpu_custom_call.1} parent=1 // pred_check
      _
    $region31: #{tpu_custom_call.1} parent=1 // pred_check_branch
      %82 = sbr.rel (0) target = $region33
    $region32: #{tpu_custom_call.1} parent=1 // pred_region
      _
    $region33: #{tpu_custom_call.1} parent=1 // pred_fallthru
      _
    // Predicated region
    $region34: #{tpu_custom_call.1} parent=1 // pred_check
      _
    $region35: #{tpu_custom_call.1} parent=1 // pred_check_branch
      %84 = sbr.rel (0) target = $region37
    $region36: #{tpu_custom_call.1} parent=1 // pred_region
      %85 = dma.done [#allocation6], 1024
    $region37: #{tpu_custom_call.1} parent=1 // pred_fallthru
      _
    // Predicated region
    $region38: #{tpu_custom_call.1} parent=1 // pred_check
      _
    $region39: #{tpu_custom_call.1} parent=1 // pred_check_branch
      %87 = sbr.rel (0) target = $region41
    $region40: #{tpu_custom_call.1} parent=1 // pred_region
      %88 = dma.done [#allocation9], 2048
    $region41: #{tpu_custom_call.1} parent=1 // pred_fallthru
      _
    // Predicated region
    $region42: #{tpu_custom_call.1} parent=1 // pred_check
      _
    $region43: #{tpu_custom_call.1} parent=1 // pred_check_branch
      %90 = sbr.rel (0) target = $region45
    $region44: #{tpu_custom_call.1} parent=1 // pred_region
      %91 = dma.done [#allocation9], 4096
    $region45: #{tpu_custom_call.1} parent=1 // pred_fallthru
      _
    // Predicated region
    $region46: #{tpu_custom_call.1} parent=1 // pred_check
      _
    $region47: #{tpu_custom_call.1} parent=1 // pred_check_branch
      %93 = sbr.rel (0) target = $region49
    $region48: #{tpu_custom_call.1} parent=1 // pred_region
      %94 = dma.done [#allocation12], 4096
    $region49: #{tpu_custom_call.1} parent=1 // pred_fallthru
      _
    // Predicated region
    $region50: #{tpu_custom_call.1} parent=1 // pred_check
      _
    $region51: #{tpu_custom_call.1} parent=1 // pred_check_branch
      %96 = sbr.rel (0) target = $region53
    $region52: #{tpu_custom_call.1} parent=1 // pred_region
      %97 = dma.done [#allocation12], 2048
    $region53: #{tpu_custom_call.1} parent=1 // pred_fallthru
      _
    %p98 = scmp.eq.s32.totalorder 0, 0
    // Predicated region
    $region54: #{tpu_custom_call.1} parent=1 // pred_check
      %p99 = pneg %p98
    $region55: #{tpu_custom_call.1} parent=1 // pred_check_branch
      %101 = sbr.rel (%p99) target = $region57
    $region56: #{tpu_custom_call.1} parent=1 // pred_region
      %102 = vst [vmem:[#allocation2] sm:$0xff] 0.0
      %103 = vst [vmem:[#allocation3] sm:$0xff] 0.0
      %104 = vst [vmem:[#allocation4] sm:$0xff] 0.0
    $region57: #{tpu_custom_call.1} parent=1 // pred_fallthru
      _
    %v105 = vld [vmem:[#allocation8] sm:$0xff]
    %v106 = vld [vmem:[#allocation8 + $0x8] sm:$0xff]
    %v107 = vld [vmem:[#allocation8 + $0x10] sm:$0xff]
    %v108 = vld [vmem:[#allocation8 + $0x18] sm:$0xff]
    %v109 = vld [vmem:[#allocation8 + $0x20] sm:$0xff]
    %v110 = vld [vmem:[#allocation8 + $0x28] sm:$0xff]
    %v111 = vld [vmem:[#allocation8 + $0x30] sm:$0xff]
    %v112 = vld [vmem:[#allocation8 + $0x38] sm:$0xff]
    %v113 = vld [vmem:[#allocation8 + $0x40] sm:$0xff]
    %v114 = vld [vmem:[#allocation8 + $0x48] sm:$0xff]
    %v115 = vld [vmem:[#allocation8 + $0x50] sm:$0xff]
    %v116 = vld [vmem:[#allocation8 + $0x58] sm:$0xff]
    %v117 = vld [vmem:[#allocation8 + $0x60] sm:$0xff]
    %v118 = vld [vmem:[#allocation8 + $0x68] sm:$0xff]
    %v119 = vld [vmem:[#allocation8 + $0x70] sm:$0xff]
    %v120 = vld [vmem:[#allocation8 + $0x78] sm:$0xff]
    %v121 = vld [vmem:[#allocation10] sm:$0xff]
    %v122 = vld [vmem:[#allocation10 + $0x8] sm:$0xff]
    %v123 = vld [vmem:[#allocation10 + $0x10] sm:$0xff]
    %v124 = vld [vmem:[#allocation10 + $0x18] sm:$0xff]
    %v125 = vld [vmem:[#allocation10 + $0x20] sm:$0xff]
    %v126 = vld [vmem:[#allocation10 + $0x28] sm:$0xff]
    %v127 = vld [vmem:[#allocation10 + $0x30] sm:$0xff]
    %v128 = vld [vmem:[#allocation10 + $0x38] sm:$0xff]
    %v129 = vld [vmem:[#allocation10 + $0x40] sm:$0xff]
    %v130 = vld [vmem:[#allocation10 + $0x48] sm:$0xff]
    %v131 = vld [vmem:[#allocation10 + $0x50] sm:$0xff]
    %v132 = vld [vmem:[#allocation10 + $0x58] sm:$0xff]
    %v133 = vld [vmem:[#allocation10 + $0x60] sm:$0xff]
    %v134 = vld [vmem:[#allocation10 + $0x68] sm:$0xff]
    %v135 = vld [vmem:[#allocation10 + $0x70] sm:$0xff]
    %v136 = vld [vmem:[#allocation10 + $0x78] sm:$0xff]
    %v137 = vld [vmem:[#allocation10 + $0x80] sm:$0xff]
    %v138 = vld [vmem:[#allocation10 + $0x88] sm:$0xff]
    %v139 = vld [vmem:[#allocation10 + $0x90] sm:$0xff]
    %v140 = vld [vmem:[#allocation10 + $0x98] sm:$0xff]
    %v141 = vld [vmem:[#allocation10 + $0xa0] sm:$0xff]
    %v142 = vld [vmem:[#allocation10 + $0xa8] sm:$0xff]
    %v143 = vld [vmem:[#allocation10 + $0xb0] sm:$0xff]
    %v144 = vld [vmem:[#allocation10 + $0xb8] sm:$0xff]
    %v145 = vld [vmem:[#allocation10 + $0xc0] sm:$0xff]
    %v146 = vld [vmem:[#allocation10 + $0xc8] sm:$0xff]
    %v147 = vld [vmem:[#allocation10 + $0xd0] sm:$0xff]
    %v148 = vld [vmem:[#allocation10 + $0xd8] sm:$0xff]
    %v149 = vld [vmem:[#allocation10 + $0xe0] sm:$0xff]
    %v150 = vld [vmem:[#allocation10 + $0xe8] sm:$0xff]
    %v151 = vld [vmem:[#allocation10 + $0xf0] sm:$0xff]
    %v152 = vld [vmem:[#allocation10 + $0xf8] sm:$0xff]
    %v153 = vld [vmem:[#allocation11] sm:$0xff]
    %v154 = vld [vmem:[#allocation11 + $0x8] sm:$0xff]
    %v155 = vld [vmem:[#allocation11 + $0x10] sm:$0xff]
    %v156 = vld [vmem:[#allocation11 + $0x18] sm:$0xff]
    %v157 = vld [vmem:[#allocation11 + $0x20] sm:$0xff]
    %v158 = vld [vmem:[#allocation11 + $0x28] sm:$0xff]
    %v159 = vld [vmem:[#allocation11 + $0x30] sm:$0xff]
    %v160 = vld [vmem:[#allocation11 + $0x38] sm:$0xff]
    %v161 = vld [vmem:[#allocation11 + $0x40] sm:$0xff]
    %v162 = vld [vmem:[#allocation11 + $0x48] sm:$0xff]
    %v163 = vld [vmem:[#allocation11 + $0x50] sm:$0xff]
    %v164 = vld [vmem:[#allocation11 + $0x58] sm:$0xff]
    %v165 = vld [vmem:[#allocation11 + $0x60] sm:$0xff]
    %v166 = vld [vmem:[#allocation11 + $0x68] sm:$0xff]
    %v167 = vld [vmem:[#allocation11 + $0x70] sm:$0xff]
    %v168 = vld [vmem:[#allocation11 + $0x78] sm:$0xff]
    %v169 = vld [vmem:[#allocation11 + $0x80] sm:$0xff]
    %v170 = vld [vmem:[#allocation11 + $0x88] sm:$0xff]
    %v171 = vld [vmem:[#allocation11 + $0x90] sm:$0xff]
    %v172 = vld [vmem:[#allocation11 + $0x98] sm:$0xff]
    %v173 = vld [vmem:[#allocation11 + $0xa0] sm:$0xff]
    %v174 = vld [vmem:[#allocation11 + $0xa8] sm:$0xff]
    %v175 = vld [vmem:[#allocation11 + $0xb0] sm:$0xff]
    %v176 = vld [vmem:[#allocation11 + $0xb8] sm:$0xff]
    %v177 = vld [vmem:[#allocation11 + $0xc0] sm:$0xff]
    %v178 = vld [vmem:[#allocation11 + $0xc8] sm:$0xff]
    %v179 = vld [vmem:[#allocation11 + $0xd0] sm:$0xff]
    %v180 = vld [vmem:[#allocation11 + $0xd8] sm:$0xff]
    %v181 = vld [vmem:[#allocation11 + $0xe0] sm:$0xff]
    %v182 = vld [vmem:[#allocation11 + $0xe8] sm:$0xff]
    %v183 = vld [vmem:[#allocation11 + $0xf0] sm:$0xff]
    %v184 = vld [vmem:[#allocation11 + $0xf8] sm:$0xff]
    %v185 = vld [vmem:[%s4] sm:$0x1]
    %v187 = vlaneseq
    %v188 = vshrl.u32 %v187, 7
    %v189 = vsub.s32 0, %v188
    %v190 = vrot.slane %v185, %v189
    %v192 = vld [vmem:[%s5] sm:$0x1]
    %v194 = vlaneseq
    %v195 = vshrl.u32 %v194, 7
    %v196 = vsub.s32 0, %v195
    %v197 = vrot.slane %v192, %v196
    %v199 = vld [vmem:[#allocation2] sm:$0xff]
    %v200 = vld [vmem:[#allocation3] sm:$0xff]
    %v201 = vld [vmem:[#allocation4] sm:$0xff]
    %v202 = vld [vmem:[#allocation5] sm:$0x1]
    %v203 = vld [vmem:[#allocation5 + $0x8] sm:$0x1]
    %v204 = vld [vmem:[#allocation5 + $0x10] sm:$0x1]
    %v205 = vld [vmem:[#allocation5 + $0x18] sm:$0x1]
    %v206 = vld [vmem:[#allocation5 + $0x20] sm:$0x1]
    %v207 = vld [vmem:[#allocation5 + $0x28] sm:$0x1]
    %v208 = vld [vmem:[#allocation5 + $0x30] sm:$0x1]
    %v209 = vld [vmem:[#allocation5 + $0x38] sm:$0x1]
    %210 = vmatprep.subr.mxu0 0.0
    %211 = vmatpush1.msra.mxu0 %v105
    %212 = vmatprep.subr.mxu0 0.0
    %213 = vmatpush1.msra.mxu0 %v106
    %214 = vmatprep.subr.mxu0 0.0
    %215 = vmatpush1.msra.mxu0 %v107
    %216 = vmatprep.subr.mxu0 0.0
    %217 = vmatpush1.msra.mxu0 %v108
    %218 = vmatprep.subr.mxu0 0.0
    %219 = vmatpush1.msra.mxu0 %v109
    %220 = vmatprep.subr.mxu0 0.0
    %221 = vmatpush1.msra.mxu0 %v110
    %222 = vmatprep.subr.mxu0 0.0
    %223 = vmatpush1.msra.mxu0 %v111
    %224 = vmatprep.subr.mxu0 0.0
    %225 = vmatpush1.msra.mxu0 %v112
    %226 = vmatprep.subr.mxu0 0.0
    %227 = vmatpush1.msra.mxu0 %v113
    %228 = vmatprep.subr.mxu0 0.0
    %229 = vmatpush1.msra.mxu0 %v114
    %230 = vmatprep.subr.mxu0 0.0
    %231 = vmatpush1.msra.mxu0 %v115
    %232 = vmatprep.subr.mxu0 0.0
    %233 = vmatpush1.msra.mxu0 %v116
    %234 = vmatprep.subr.mxu0 0.0
    %235 = vmatpush1.msra.mxu0 %v117
    %236 = vmatprep.subr.mxu0 0.0
    %237 = vmatpush1.msra.mxu0 %v118
    %238 = vmatprep.subr.mxu0 0.0
    %239 = vmatpush1.msra.mxu0 %v119
    %240 = vmatprep.subr.mxu0 0.0
    %241 = vmatpush1.msra.mxu0 %v120
    %242 = vmatprep.subr.mxu0 0.0
    %243 = vmatpush1.msra.mxu0 0.0
    %244 = vmatprep.subr.mxu0 0.0
    %245 = vmatpush1.msra.mxu0 0.0
    %246 = vmatprep.subr.mxu0 0.0
    %247 = vmatpush1.msra.mxu0 0.0
    %248 = vmatprep.subr.mxu0 0.0
    %249 = vmatpush1.msra.mxu0 0.0
    %250 = vmatprep.subr.mxu0 0.0
    %251 = vmatpush1.msra.mxu0 0.0
    %252 = vmatprep.subr.mxu0 0.0
    %253 = vmatpush1.msra.mxu0 0.0
    %254 = vmatprep.subr.mxu0 0.0
    %255 = vmatpush1.msra.mxu0 0.0
    %256 = vmatprep.subr.mxu0 0.0
    %257 = vmatpush1.msra.mxu0 0.0
    %258 = vmatprep.subr.mxu0 0.0
    %259 = vmatpush1.msra.mxu0 0.0
    %260 = vmatprep.subr.mxu0 0.0
    %261 = vmatpush1.msra.mxu0 0.0
    %262 = vmatprep.subr.mxu0 0.0
    %263 = vmatpush1.msra.mxu0 0.0
    %264 = vmatprep.subr.mxu0 0.0
    %265 = vmatpush1.msra.mxu0 0.0
    %266 = vmatprep.subr.mxu0 0.0
    %267 = vmatpush1.msra.mxu0 0.0
    %268 = vmatprep.subr.mxu0 0.0
    %269 = vmatpush1.msra.mxu0 0.0
    %270 = vmatprep.subr.mxu0 0.0
    %271 = vmatpush1.msra.mxu0 0.0
    %272 = vmatprep.subr.mxu0 0.0
    %273 = vmatpush1.msra.mxu0 0.0
    %274 = vmatprep.mubr.f32.mxu0 0.0
    %275 = vmatmul.mubr.f32.gmra.mrb[0].mxu0 %v199
    %v276 = vpop.f32.mrb[0].mxu0
    %v277 = vadd.f32 0.0, %v276
    %v278 = vpop.f32.mrb[0].mxu0
    %279 = vdwg.mxu0
    %v281 = vrot.slane %v277, 1
    %v282 = vrot.slane %v277, 2
    %v283 = vrot.slane %v277, 3
    %v284 = vrot.slane %v277, 4
    %v285 = vrot.slane %v277, 5
    %v286 = vrot.slane %v277, 6
    %v287 = vrot.slane %v277, 7
    %v296 = vadd.f32 %v202, %v277
    %v297 = vadd.f32 %v203, %v281
    %v298 = vadd.f32 %v204, %v282
    %v299 = vadd.f32 %v205, %v283
    %v300 = vadd.f32 %v206, %v284
    %v301 = vadd.f32 %v207, %v285
    %v302 = vadd.f32 %v208, %v286
    %v303 = vadd.f32 %v209, %v287
    %v304 = vmax.f32 %v296, 0.0
    %v305 = vmax.f32 %v297, 0.0
    %v306 = vmax.f32 %v298, 0.0
    %v307 = vmax.f32 %v299, 0.0
    %v308 = vmax.f32 %v300, 0.0
    %v309 = vmax.f32 %v301, 0.0
    %v310 = vmax.f32 %v302, 0.0
    %v311 = vmax.f32 %v303, 0.0
    %v320 = vrot.slane %v305, 7
    %vm321 = vcmask 1041409
    %v322 = vsel %vm321, %v320, %v304
    %v323 = vrot.slane %v306, 6
    %vm324 = vcmask 1042434
    %v325 = vsel %vm324, %v323, %v322
    %v326 = vrot.slane %v307, 5
    %vm327 = vcmask 1043459
    %v328 = vsel %vm327, %v326, %v325
    %v329 = vrot.slane %v308, 4
    %vm330 = vcmask 1044484
    %v331 = vsel %vm330, %v329, %v328
    %v332 = vrot.slane %v309, 3
    %vm333 = vcmask 1045509
    %v334 = vsel %vm333, %v332, %v331
    %v335 = vrot.slane %v310, 2
    %vm336 = vcmask 1046534
    %v337 = vsel %vm336, %v335, %v334
    %v338 = vrot.slane %v311, 1
    %vm339 = vcmask 1047559
    %v340 = vsel %vm339, %v338, %v337
    %342 = vmatprep.subr.mxu0 0.0
    %343 = vmatpush1.msra.mxu0 %v121
    %344 = vmatprep.subr.mxu0 0.0
    %345 = vmatpush1.msra.mxu0 %v122
    %346 = vmatprep.subr.mxu0 0.0
    %347 = vmatpush1.msra.mxu0 %v123
    %348 = vmatprep.subr.mxu0 0.0
    %349 = vmatpush1.msra.mxu0 %v124
    %350 = vmatprep.subr.mxu0 0.0
    %351 = vmatpush1.msra.mxu0 %v125
    %352 = vmatprep.subr.mxu0 0.0
    %353 = vmatpush1.msra.mxu0 %v126
    %354 = vmatprep.subr.mxu0 0.0
    %355 = vmatpush1.msra.mxu0 %v127
    %356 = vmatprep.subr.mxu0 0.0
    %357 = vmatpush1.msra.mxu0 %v128
    %358 = vmatprep.subr.mxu0 0.0
    %359 = vmatpush1.msra.mxu0 %v129
    %360 = vmatprep.subr.mxu0 0.0
    %361 = vmatpush1.msra.mxu0 %v130
    %362 = vmatprep.subr.mxu0 0.0
    %363 = vmatpush1.msra.mxu0 %v131
    %364 = vmatprep.subr.mxu0 0.0
    %365 = vmatpush1.msra.mxu0 %v132
    %366 = vmatprep.subr.mxu0 0.0
    %367 = vmatpush1.msra.mxu0 %v133
    %368 = vmatprep.subr.mxu0 0.0
    %369 = vmatpush1.msra.mxu0 %v134
    %370 = vmatprep.subr.mxu0 0.0
    %371 = vmatpush1.msra.mxu0 %v135
    %372 = vmatprep.subr.mxu0 0.0
    %373 = vmatpush1.msra.mxu0 %v136
    %374 = vmatprep.subr.mxu0 0.0
    %375 = vmatpush1.msra.mxu0 %v137
    %376 = vmatprep.subr.mxu0 0.0
    %377 = vmatpush1.msra.mxu0 %v138
    %378 = vmatprep.subr.mxu0 0.0
    %379 = vmatpush1.msra.mxu0 %v139
    %380 = vmatprep.subr.mxu0 0.0
    %381 = vmatpush1.msra.mxu0 %v140
    %382 = vmatprep.subr.mxu0 0.0
    %383 = vmatpush1.msra.mxu0 %v141
    %384 = vmatprep.subr.mxu0 0.0
    %385 = vmatpush1.msra.mxu0 %v142
    %386 = vmatprep.subr.mxu0 0.0
    %387 = vmatpush1.msra.mxu0 %v143
    %388 = vmatprep.subr.mxu0 0.0
    %389 = vmatpush1.msra.mxu0 %v144
    %390 = vmatprep.subr.mxu0 0.0
    %391 = vmatpush1.msra.mxu0 %v145
    %392 = vmatprep.subr.mxu0 0.0
    %393 = vmatpush1.msra.mxu0 %v146
    %394 = vmatprep.subr.mxu0 0.0
    %395 = vmatpush1.msra.mxu0 %v147
    %396 = vmatprep.subr.mxu0 0.0
    %397 = vmatpush1.msra.mxu0 %v148
    %398 = vmatprep.subr.mxu0 0.0
    %399 = vmatpush1.msra.mxu0 %v149
    %400 = vmatprep.subr.mxu0 0.0
    %401 = vmatpush1.msra.mxu0 %v150
    %402 = vmatprep.subr.mxu0 0.0
    %403 = vmatpush1.msra.mxu0 %v151
    %404 = vmatprep.subr.mxu0 0.0
    %405 = vmatpush1.msra.mxu0 %v152
    %406 = vmatprep.mubr.f32.mxu0 %v200
    %407 = vmatmul.mubr.f32.gmra.mrb[0].mxu0 %v340
    %v408 = vpop.f32.mrb[0].mxu0
    %v409 = vadd.f32 %v190, %v408
    %v410 = vpop.f32.mrb[0].mxu0
    %411 = vdwg.mxu0
    %v412 = vmax.f32 %v409, 0.0
    %413 = vmatprep.subr.mxu0 0.0
    %414 = vmatpush1.msra.mxu0 %v153
    %415 = vmatprep.subr.mxu0 0.0
    %416 = vmatpush1.msra.mxu0 %v154
    %417 = vmatprep.subr.mxu0 0.0
    %418 = vmatpush1.msra.mxu0 %v155
    %419 = vmatprep.subr.mxu0 0.0
    %420 = vmatpush1.msra.mxu0 %v156
    %421 = vmatprep.subr.mxu0 0.0
    %422 = vmatpush1.msra.mxu0 %v157
    %423 = vmatprep.subr.mxu0 0.0
    %424 = vmatpush1.msra.mxu0 %v158
    %425 = vmatprep.subr.mxu0 0.0
    %426 = vmatpush1.msra.mxu0 %v159
    %427 = vmatprep.subr.mxu0 0.0
    %428 = vmatpush1.msra.mxu0 %v160
    %429 = vmatprep.subr.mxu0 0.0
    %430 = vmatpush1.msra.mxu0 %v161
    %431 = vmatprep.subr.mxu0 0.0
    %432 = vmatpush1.msra.mxu0 %v162
    %433 = vmatprep.subr.mxu0 0.0
    %434 = vmatpush1.msra.mxu0 %v163
    %435 = vmatprep.subr.mxu0 0.0
    %436 = vmatpush1.msra.mxu0 %v164
    %437 = vmatprep.subr.mxu0 0.0
    %438 = vmatpush1.msra.mxu0 %v165
    %439 = vmatprep.subr.mxu0 0.0
    %440 = vmatpush1.msra.mxu0 %v166
    %441 = vmatprep.subr.mxu0 0.0
    %442 = vmatpush1.msra.mxu0 %v167
    %443 = vmatprep.subr.mxu0 0.0
    %444 = vmatpush1.msra.mxu0 %v168
    %445 = vmatprep.subr.mxu0 0.0
    %446 = vmatpush1.msra.mxu0 %v169
    %447 = vmatprep.subr.mxu0 0.0
    %448 = vmatpush1.msra.mxu0 %v170
    %449 = vmatprep.subr.mxu0 0.0
    %450 = vmatpush1.msra.mxu0 %v171
    %451 = vmatprep.subr.mxu0 0.0
    %452 = vmatpush1.msra.mxu0 %v172
    %453 = vmatprep.subr.mxu0 0.0
    %454 = vmatpush1.msra.mxu0 %v173
    %455 = vmatprep.subr.mxu0 0.0
    %456 = vmatpush1.msra.mxu0 %v174
    %457 = vmatprep.subr.mxu0 0.0
    %458 = vmatpush1.msra.mxu0 %v175
    %459 = vmatprep.subr.mxu0 0.0
    %460 = vmatpush1.msra.mxu0 %v176
    %461 = vmatprep.subr.mxu0 0.0
    %462 = vmatpush1.msra.mxu0 %v177
    %463 = vmatprep.subr.mxu0 0.0
    %464 = vmatpush1.msra.mxu0 %v178
    %465 = vmatprep.subr.mxu0 0.0
    %466 = vmatpush1.msra.mxu0 %v179
    %467 = vmatprep.subr.mxu0 0.0
    %468 = vmatpush1.msra.mxu0 %v180
    %469 = vmatprep.subr.mxu0 0.0
    %470 = vmatpush1.msra.mxu0 %v181
    %471 = vmatprep.subr.mxu0 0.0
    %472 = vmatpush1.msra.mxu0 %v182
    %473 = vmatprep.subr.mxu0 0.0
    %474 = vmatpush1.msra.mxu0 %v183
    %475 = vmatprep.subr.mxu0 0.0
    %476 = vmatpush1.msra.mxu0 %v184
    %477 = vmatprep.mubr.f32.mxu0 %v201
    %478 = vmatmul.mubr.f32.gmra.mrb[0].mxu0 %v412
    %v479 = vpop.f32.mrb[0].mxu0
    %v480 = vadd.f32 %v197, %v479
    %v481 = vpop.f32.mrb[0].mxu0
    %482 = vdwg.mxu0
    %v483 = vmax.f32 %v480, 0.0
    %v484 = vld [vmem:[#allocation5 + $0x1] sm:$0x1]
    %v485 = vld [vmem:[#allocation5 + $0x9] sm:$0x1]
    %v486 = vld [vmem:[#allocation5 + $0x11] sm:$0x1]
    %v487 = vld [vmem:[#allocation5 + $0x19] sm:$0x1]
    %v488 = vld [vmem:[#allocation5 + $0x21] sm:$0x1]
    %v489 = vld [vmem:[#allocation5 + $0x29] sm:$0x1]
    %v490 = vld [vmem:[#allocation5 + $0x31] sm:$0x1]
    %v491 = vld [vmem:[#allocation5 + $0x39] sm:$0x1]
    %492 = vmatprep.subr.mxu0 0.0
    %493 = vmatpush1.msra.mxu0 %v105
    %494 = vmatprep.subr.mxu0 0.0
    %495 = vmatpush1.msra.mxu0 %v106
    %496 = vmatprep.subr.mxu0 0.0
    %497 = vmatpush1.msra.mxu0 %v107
    %498 = vmatprep.subr.mxu0 0.0
    %499 = vmatpush1.msra.mxu0 %v108
    %500 = vmatprep.subr.mxu0 0.0
    %501 = vmatpush1.msra.mxu0 %v109
    %502 = vmatprep.subr.mxu0 0.0
    %503 = vmatpush1.msra.mxu0 %v110
    %504 = vmatprep.subr.mxu0 0.0
    %505 = vmatpush1.msra.mxu0 %v111
    %506 = vmatprep.subr.mxu0 0.0
    %507 = vmatpush1.msra.mxu0 %v112
    %508 = vmatprep.subr.mxu0 0.0
    %509 = vmatpush1.msra.mxu0 %v113
    %510 = vmatprep.subr.mxu0 0.0
    %511 = vmatpush1.msra.mxu0 %v114
    %512 = vmatprep.subr.mxu0 0.0
    %513 = vmatpush1.msra.mxu0 %v115
    %514 = vmatprep.subr.mxu0 0.0
    %515 = vmatpush1.msra.mxu0 %v116
    %516 = vmatprep.subr.mxu0 0.0
    %517 = vmatpush1.msra.mxu0 %v117
    %518 = vmatprep.subr.mxu0 0.0
    %519 = vmatpush1.msra.mxu0 %v118
    %520 = vmatprep.subr.mxu0 0.0
    %521 = vmatpush1.msra.mxu0 %v119
    %522 = vmatprep.subr.mxu0 0.0
    %523 = vmatpush1.msra.mxu0 %v120
    %524 = vmatprep.subr.mxu0 0.0
    %525 = vmatpush1.msra.mxu0 0.0
    %526 = vmatprep.subr.mxu0 0.0
    %527 = vmatpush1.msra.mxu0 0.0
    %528 = vmatprep.subr.mxu0 0.0
    %529 = vmatpush1.msra.mxu0 0.0
    %530 = vmatprep.subr.mxu0 0.0
    %531 = vmatpush1.msra.mxu0 0.0
    %532 = vmatprep.subr.mxu0 0.0
    %533 = vmatpush1.msra.mxu0 0.0
    %534 = vmatprep.subr.mxu0 0.0
    %535 = vmatpush1.msra.mxu0 0.0
    %536 = vmatprep.subr.mxu0 0.0
    %537 = vmatpush1.msra.mxu0 0.0
    %538 = vmatprep.subr.mxu0 0.0
    %539 = vmatpush1.msra.mxu0 0.0
    %540 = vmatprep.subr.mxu0 0.0
    %541 = vmatpush1.msra.mxu0 0.0
    %542 = vmatprep.subr.mxu0 0.0
    %543 = vmatpush1.msra.mxu0 0.0
    %544 = vmatprep.subr.mxu0 0.0
    %545 = vmatpush1.msra.mxu0 0.0
    %546 = vmatprep.subr.mxu0 0.0
    %547 = vmatpush1.msra.mxu0 0.0
    %548 = vmatprep.subr.mxu0 0.0
    %549 = vmatpush1.msra.mxu0 0.0
    %550 = vmatprep.subr.mxu0 0.0
    %551 = vmatpush1.msra.mxu0 0.0
    %552 = vmatprep.subr.mxu0 0.0
    %553 = vmatpush1.msra.mxu0 0.0
    %554 = vmatprep.subr.mxu0 0.0
    %555 = vmatpush1.msra.mxu0 0.0
    %556 = vmatprep.mubr.f32.mxu0 0.0
    %557 = vmatmul.mubr.f32.gmra.mrb[0].mxu0 %v340
    %v558 = vpop.f32.mrb[0].mxu0
    %v559 = vadd.f32 0.0, %v558
    %v560 = vpop.f32.mrb[0].mxu0
    %561 = vdwg.mxu0
    %v563 = vrot.slane %v559, 1
    %v564 = vrot.slane %v559, 2
    %v565 = vrot.slane %v559, 3
    %v566 = vrot.slane %v559, 4
    %v567 = vrot.slane %v559, 5
    %v568 = vrot.slane %v559, 6
    %v569 = vrot.slane %v559, 7
    %v578 = vadd.f32 %v484, %v559
    %v579 = vadd.f32 %v485, %v563
    %v580 = vadd.f32 %v486, %v564
    %v581 = vadd.f32 %v487, %v565
    %v582 = vadd.f32 %v488, %v566
    %v583 = vadd.f32 %v489, %v567
    %v584 = vadd.f32 %v490, %v568
    %v585 = vadd.f32 %v491, %v569
    %v586 = vmax.f32 %v578, 0.0
    %v587 = vmax.f32 %v579, 0.0
    %v588 = vmax.f32 %v580, 0.0
    %v589 = vmax.f32 %v581, 0.0
    %v590 = vmax.f32 %v582, 0.0
    %v591 = vmax.f32 %v583, 0.0
    %v592 = vmax.f32 %v584, 0.0
    %v593 = vmax.f32 %v585, 0.0
    %v602 = vrot.slane %v587, 7
    %v603 = vsel %vm321, %v602, %v586
    %v604 = vrot.slane %v588, 6
    %v605 = vsel %vm324, %v604, %v603
    %v606 = vrot.slane %v589, 5
    %v607 = vsel %vm327, %v606, %v605
    %v608 = vrot.slane %v590, 4
    %v609 = vsel %vm330, %v608, %v607
    %v610 = vrot.slane %v591, 3
    %v611 = vsel %vm333, %v610, %v609
    %v612 = vrot.slane %v592, 2
    %v613 = vsel %vm336, %v612, %v611
    %v614 = vrot.slane %v593, 1
    %v615 = vsel %vm339, %v614, %v613
    %617 = vmatprep.subr.mxu0 0.0
    %618 = vmatpush1.msra.mxu0 %v121
    %619 = vmatprep.subr.mxu0 0.0
    %620 = vmatpush1.msra.mxu0 %v122
    %621 = vmatprep.subr.mxu0 0.0
    %622 = vmatpush1.msra.mxu0 %v123
    %623 = vmatprep.subr.mxu0 0.0
    %624 = vmatpush1.msra.mxu0 %v124
    %625 = vmatprep.subr.mxu0 0.0
    %626 = vmatpush1.msra.mxu0 %v125
    %627 = vmatprep.subr.mxu0 0.0
    %628 = vmatpush1.msra.mxu0 %v126
    %629 = vmatprep.subr.mxu0 0.0
    %630 = vmatpush1.msra.mxu0 %v127
    %631 = vmatprep.subr.mxu0 0.0
    %632 = vmatpush1.msra.mxu0 %v128
    %633 = vmatprep.subr.mxu0 0.0
    %634 = vmatpush1.msra.mxu0 %v129
    %635 = vmatprep.subr.mxu0 0.0
    %636 = vmatpush1.msra.mxu0 %v130
    %637 = vmatprep.subr.mxu0 0.0
    %638 = vmatpush1.msra.mxu0 %v131
    %639 = vmatprep.subr.mxu0 0.0
    %640 = vmatpush1.msra.mxu0 %v132
    %641 = vmatprep.subr.mxu0 0.0
    %642 = vmatpush1.msra.mxu0 %v133
    %643 = vmatprep.subr.mxu0 0.0
    %644 = vmatpush1.msra.mxu0 %v134
    %645 = vmatprep.subr.mxu0 0.0
    %646 = vmatpush1.msra.mxu0 %v135
    %647 = vmatprep.subr.mxu0 0.0
    %648 = vmatpush1.msra.mxu0 %v136
    %649 = vmatprep.subr.mxu0 0.0
    %650 = vmatpush1.msra.mxu0 %v137
    %651 = vmatprep.subr.mxu0 0.0
    %652 = vmatpush1.msra.mxu0 %v138
    %653 = vmatprep.subr.mxu0 0.0
    %654 = vmatpush1.msra.mxu0 %v139
    %655 = vmatprep.subr.mxu0 0.0
    %656 = vmatpush1.msra.mxu0 %v140
    %657 = vmatprep.subr.mxu0 0.0
    %658 = vmatpush1.msra.mxu0 %v141
    %659 = vmatprep.subr.mxu0 0.0
    %660 = vmatpush1.msra.mxu0 %v142
    %661 = vmatprep.subr.mxu0 0.0
    %662 = vmatpush1.msra.mxu0 %v143
    %663 = vmatprep.subr.mxu0 0.0
    %664 = vmatpush1.msra.mxu0 %v144
    %665 = vmatprep.subr.mxu0 0.0
    %666 = vmatpush1.msra.mxu0 %v145
    %667 = vmatprep.subr.mxu0 0.0
    %668 = vmatpush1.msra.mxu0 %v146
    %669 = vmatprep.subr.mxu0 0.0
    %670 = vmatpush1.msra.mxu0 %v147
    %671 = vmatprep.subr.mxu0 0.0
    %672 = vmatpush1.msra.mxu0 %v148
    %673 = vmatprep.subr.mxu0 0.0
    %674 = vmatpush1.msra.mxu0 %v149
    %675 = vmatprep.subr.mxu0 0.0
    %676 = vmatpush1.msra.mxu0 %v150
    %677 = vmatprep.subr.mxu0 0.0
    %678 = vmatpush1.msra.mxu0 %v151
    %679 = vmatprep.subr.mxu0 0.0
    %680 = vmatpush1.msra.mxu0 %v152
    %681 = vmatprep.mubr.f32.mxu0 %v412
    %682 = vmatmul.mubr.f32.gmra.mrb[0].mxu0 %v615
    %v683 = vpop.f32.mrb[0].mxu0
    %v684 = vadd.f32 %v190, %v683
    %v685 = vpop.f32.mrb[0].mxu0
    %686 = vdwg.mxu0
    %v687 = vmax.f32 %v684, 0.0
    %688 = vmatprep.subr.mxu0 0.0
    %689 = vmatpush1.msra.mxu0 %v153
    %690 = vmatprep.subr.mxu0 0.0
    %691 = vmatpush1.msra.mxu0 %v154
    %692 = vmatprep.subr.mxu0 0.0
    %693 = vmatpush1.msra.mxu0 %v155
    %694 = vmatprep.subr.mxu0 0.0
    %695 = vmatpush1.msra.mxu0 %v156
    %696 = vmatprep.subr.mxu0 0.0
    %697 = vmatpush1.msra.mxu0 %v157
    %698 = vmatprep.subr.mxu0 0.0
    %699 = vmatpush1.msra.mxu0 %v158
    %700 = vmatprep.subr.mxu0 0.0
    %701 = vmatpush1.msra.mxu0 %v159
    %702 = vmatprep.subr.mxu0 0.0
    %703 = vmatpush1.msra.mxu0 %v160
    %704 = vmatprep.subr.mxu0 0.0
    %705 = vmatpush1.msra.mxu0 %v161
    %706 = vmatprep.subr.mxu0 0.0
    %707 = vmatpush1.msra.mxu0 %v162
    %708 = vmatprep.subr.mxu0 0.0
    %709 = vmatpush1.msra.mxu0 %v163
    %710 = vmatprep.subr.mxu0 0.0
    %711 = vmatpush1.msra.mxu0 %v164
    %712 = vmatprep.subr.mxu0 0.0
    %713 = vmatpush1.msra.mxu0 %v165
    %714 = vmatprep.subr.mxu0 0.0
    %715 = vmatpush1.msra.mxu0 %v166
    %716 = vmatprep.subr.mxu0 0.0
    %717 = vmatpush1.msra.mxu0 %v167
    %718 = vmatprep.subr.mxu0 0.0
    %719 = vmatpush1.msra.mxu0 %v168
    %720 = vmatprep.subr.mxu0 0.0
    %721 = vmatpush1.msra.mxu0 %v169
    %722 = vmatprep.subr.mxu0 0.0
    %723 = vmatpush1.msra.mxu0 %v170
    %724 = vmatprep.subr.mxu0 0.0
    %725 = vmatpush1.msra.mxu0 %v171
    %726 = vmatprep.subr.mxu0 0.0
    %727 = vmatpush1.msra.mxu0 %v172
    %728 = vmatprep.subr.mxu0 0.0
    %729 = vmatpush1.msra.mxu0 %v173
    %730 = vmatprep.subr.mxu0 0.0
    %731 = vmatpush1.msra.mxu0 %v174
    %732 = vmatprep.subr.mxu0 0.0
    %733 = vmatpush1.msra.mxu0 %v175
    %734 = vmatprep.subr.mxu0 0.0
    %735 = vmatpush1.msra.mxu0 %v176
    %736 = vmatprep.subr.mxu0 0.0
    %737 = vmatpush1.msra.mxu0 %v177
    %738 = vmatprep.subr.mxu0 0.0
    %739 = vmatpush1.msra.mxu0 %v178
    %740 = vmatprep.subr.mxu0 0.0
    %741 = vmatpush1.msra.mxu0 %v179
    %742 = vmatprep.subr.mxu0 0.0
    %743 = vmatpush1.msra.mxu0 %v180
    %744 = vmatprep.subr.mxu0 0.0
    %745 = vmatpush1.msra.mxu0 %v181
    %746 = vmatprep.subr.mxu0 0.0
    %747 = vmatpush1.msra.mxu0 %v182
    %748 = vmatprep.subr.mxu0 0.0
    %749 = vmatpush1.msra.mxu0 %v183
    %750 = vmatprep.subr.mxu0 0.0
    %751 = vmatpush1.msra.mxu0 %v184
    %752 = vmatprep.mubr.f32.mxu0 %v483
    %753 = vmatmul.mubr.f32.gmra.mrb[0].mxu0 %v687
    %v754 = vpop.f32.mrb[0].mxu0
    %v755 = vadd.f32 %v197, %v754
    %v756 = vpop.f32.mrb[0].mxu0
    %757 = vdwg.mxu0
    %v758 = vmax.f32 %v755, 0.0
    %v759 = vld [vmem:[#allocation5 + $0x2] sm:$0x1]
    %v760 = vld [vmem:[#allocation5 + $0xa] sm:$0x1]
    %v761 = vld [vmem:[#allocation5 + $0x12] sm:$0x1]
    %v762 = vld [vmem:[#allocation5 + $0x1a] sm:$0x1]
    %v763 = vld [vmem:[#allocation5 + $0x22] sm:$0x1]
    %v764 = vld [vmem:[#allocation5 + $0x2a] sm:$0x1]
    %v765 = vld [vmem:[#allocation5 + $0x32] sm:$0x1]
    %v766 = vld [vmem:[#allocation5 + $0x3a] sm:$0x1]
    %767 = vmatprep.subr.mxu0 0.0
    %768 = vmatpush1.msra.mxu0 %v105
    %769 = vmatprep.subr.mxu0 0.0
    %770 = vmatpush1.msra.mxu0 %v106
    %771 = vmatprep.subr.mxu0 0.0
    %772 = vmatpush1.msra.mxu0 %v107
    %773 = vmatprep.subr.mxu0 0.0
    %774 = vmatpush1.msra.mxu0 %v108
    %775 = vmatprep.subr.mxu0 0.0
    %776 = vmatpush1.msra.mxu0 %v109
    %777 = vmatprep.subr.mxu0 0.0
    %778 = vmatpush1.msra.mxu0 %v110
    %779 = vmatprep.subr.mxu0 0.0
    %780 = vmatpush1.msra.mxu0 %v111
    %781 = vmatprep.subr.mxu0 0.0
    %782 = vmatpush1.msra.mxu0 %v112
    %783 = vmatprep.subr.mxu0 0.0
    %784 = vmatpush1.msra.mxu0 %v113
    %785 = vmatprep.subr.mxu0 0.0
    %786 = vmatpush1.msra.mxu0 %v114
    %787 = vmatprep.subr.mxu0 0.0
    %788 = vmatpush1.msra.mxu0 %v115
    %789 = vmatprep.subr.mxu0 0.0
    %790 = vmatpush1.msra.mxu0 %v116
    %791 = vmatprep.subr.mxu0 0.0
    %792 = vmatpush1.msra.mxu0 %v117
    %793 = vmatprep.subr.mxu0 0.0
    %794 = vmatpush1.msra.mxu0 %v118
    %795 = vmatprep.subr.mxu0 0.0
    %796 = vmatpush1.msra.mxu0 %v119
    %797 = vmatprep.subr.mxu0 0.0
    %798 = vmatpush1.msra.mxu0 %v120
    %799 = vmatprep.subr.mxu0 0.0
    %800 = vmatpush1.msra.mxu0 0.0
    %801 = vmatprep.subr.mxu0 0.0
    %802 = vmatpush1.msra.mxu0 0.0
    %803 = vmatprep.subr.mxu0 0.0
    %804 = vmatpush1.msra.mxu0 0.0
    %805 = vmatprep.subr.mxu0 0.0
    %806 = vmatpush1.msra.mxu0 0.0
    %807 = vmatprep.subr.mxu0 0.0
    %808 = vmatpush1.msra.mxu0 0.0
    %809 = vmatprep.subr.mxu0 0.0
    %810 = vmatpush1.msra.mxu0 0.0
    %811 = vmatprep.subr.mxu0 0.0
    %812 = vmatpush1.msra.mxu0 0.0
    %813 = vmatprep.subr.mxu0 0.0
    %814 = vmatpush1.msra.mxu0 0.0
    %815 = vmatprep.subr.mxu0 0.0
    %816 = vmatpush1.msra.mxu0 0.0
    %817 = vmatprep.subr.mxu0 0.0
    %818 = vmatpush1.msra.mxu0 0.0
    %819 = vmatprep.subr.mxu0 0.0
    %820 = vmatpush1.msra.mxu0 0.0
    %821 = vmatprep.subr.mxu0 0.0
    %822 = vmatpush1.msra.mxu0 0.0
    %823 = vmatprep.subr.mxu0 0.0
    %824 = vmatpush1.msra.mxu0 0.0
    %825 = vmatprep.subr.mxu0 0.0
    %826 = vmatpush1.msra.mxu0 0.0
    %827 = vmatprep.subr.mxu0 0.0
    %828 = vmatpush1.msra.mxu0 0.0
    %829 = vmatprep.subr.mxu0 0.0
    %830 = vmatpush1.msra.mxu0 0.0
    %831 = vmatprep.mubr.f32.mxu0 0.0
    %832 = vmatmul.mubr.f32.gmra.mrb[0].mxu0 %v615
    %v833 = vpop.f32.mrb[0].mxu0
    %v834 = vadd.f32 0.0, %v833
    %v835 = vpop.f32.mrb[0].mxu0
    %836 = vdwg.mxu0
    %v838 = vrot.slane %v834, 1
    %v839 = vrot.slane %v834, 2
    %v840 = vrot.slane %v834, 3
    %v841 = vrot.slane %v834, 4
    %v842 = vrot.slane %v834, 5
    %v843 = vrot.slane %v834, 6
    %v844 = vrot.slane %v834, 7
    %v853 = vadd.f32 %v759, %v834
    %v854 = vadd.f32 %v760, %v838
    %v855 = vadd.f32 %v761, %v839
    %v856 = vadd.f32 %v762, %v840
    %v857 = vadd.f32 %v763, %v841
    %v858 = vadd.f32 %v764, %v842
    %v859 = vadd.f32 %v765, %v843
    %v860 = vadd.f32 %v766, %v844
    %v861 = vmax.f32 %v853, 0.0
    %v862 = vmax.f32 %v854, 0.0
    %v863 = vmax.f32 %v855, 0.0
    %v864 = vmax.f32 %v856, 0.0
    %v865 = vmax.f32 %v857, 0.0
    %v866 = vmax.f32 %v858, 0.0
    %v867 = vmax.f32 %v859, 0.0
    %v868 = vmax.f32 %v860, 0.0
    %v877 = vrot.slane %v862, 7
    %v878 = vsel %vm321, %v877, %v861
    %v879 = vrot.slane %v863, 6
    %v880 = vsel %vm324, %v879, %v878
    %v881 = vrot.slane %v864, 5
    %v882 = vsel %vm327, %v881, %v880
    %v883 = vrot.slane %v865, 4
    %v884 = vsel %vm330, %v883, %v882
    %v885 = vrot.slane %v866, 3
    %v886 = vsel %vm333, %v885, %v884
    %v887 = vrot.slane %v867, 2
    %v888 = vsel %vm336, %v887, %v886
    %v889 = vrot.slane %v868, 1
    %v890 = vsel %vm339, %v889, %v888
    %892 = vmatprep.subr.mxu0 0.0
    %893 = vmatpush1.msra.mxu0 %v121
    %894 = vmatprep.subr.mxu0 0.0
    %895 = vmatpush1.msra.mxu0 %v122
    %896 = vmatprep.subr.mxu0 0.0
    %897 = vmatpush1.msra.mxu0 %v123
    %898 = vmatprep.subr.mxu0 0.0
    %899 = vmatpush1.msra.mxu0 %v124
    %900 = vmatprep.subr.mxu0 0.0
    %901 = vmatpush1.msra.mxu0 %v125
    %902 = vmatprep.subr.mxu0 0.0
    %903 = vmatpush1.msra.mxu0 %v126
    %904 = vmatprep.subr.mxu0 0.0
    %905 = vmatpush1.msra.mxu0 %v127
    %906 = vmatprep.subr.mxu0 0.0
    %907 = vmatpush1.msra.mxu0 %v128
    %908 = vmatprep.subr.mxu0 0.0
    %909 = vmatpush1.msra.mxu0 %v129
    %910 = vmatprep.subr.mxu0 0.0
    %911 = vmatpush1.msra.mxu0 %v130
    %912 = vmatprep.subr.mxu0 0.0
    %913 = vmatpush1.msra.mxu0 %v131
    %914 = vmatprep.subr.mxu0 0.0
    %915 = vmatpush1.msra.mxu0 %v132
    %916 = vmatprep.subr.mxu0 0.0
    %917 = vmatpush1.msra.mxu0 %v133
    %918 = vmatprep.subr.mxu0 0.0
    %919 = vmatpush1.msra.mxu0 %v134
    %920 = vmatprep.subr.mxu0 0.0
    %921 = vmatpush1.msra.mxu0 %v135
    %922 = vmatprep.subr.mxu0 0.0
    %923 = vmatpush1.msra.mxu0 %v136
    %924 = vmatprep.subr.mxu0 0.0
    %925 = vmatpush1.msra.mxu0 %v137
    %926 = vmatprep.subr.mxu0 0.0
    %927 = vmatpush1.msra.mxu0 %v138
    %928 = vmatprep.subr.mxu0 0.0
    %929 = vmatpush1.msra.mxu0 %v139
    %930 = vmatprep.subr.mxu0 0.0
    %931 = vmatpush1.msra.mxu0 %v140
    %932 = vmatprep.subr.mxu0 0.0
    %933 = vmatpush1.msra.mxu0 %v141
    %934 = vmatprep.subr.mxu0 0.0
    %935 = vmatpush1.msra.mxu0 %v142
    %936 = vmatprep.subr.mxu0 0.0
    %937 = vmatpush1.msra.mxu0 %v143
    %938 = vmatprep.subr.mxu0 0.0
    %939 = vmatpush1.msra.mxu0 %v144
    %940 = vmatprep.subr.mxu0 0.0
    %941 = vmatpush1.msra.mxu0 %v145
    %942 = vmatprep.subr.mxu0 0.0
    %943 = vmatpush1.msra.mxu0 %v146
    %944 = vmatprep.subr.mxu0 0.0
    %945 = vmatpush1.msra.mxu0 %v147
    %946 = vmatprep.subr.mxu0 0.0
    %947 = vmatpush1.msra.mxu0 %v148
    %948 = vmatprep.subr.mxu0 0.0
    %949 = vmatpush1.msra.mxu0 %v149
    %950 = vmatprep.subr.mxu0 0.0
    %951 = vmatpush1.msra.mxu0 %v150
    %952 = vmatprep.subr.mxu0 0.0
    %953 = vmatpush1.msra.mxu0 %v151
    %954 = vmatprep.subr.mxu0 0.0
    %955 = vmatpush1.msra.mxu0 %v152
    %956 = vmatprep.mubr.f32.mxu0 %v687
    %957 = vmatmul.mubr.f32.gmra.mrb[0].mxu0 %v890
    %v958 = vpop.f32.mrb[0].mxu0
    %v959 = vadd.f32 %v190, %v958
    %v960 = vpop.f32.mrb[0].mxu0
    %961 = vdwg.mxu0
    %v962 = vmax.f32 %v959, 0.0
    %963 = vmatprep.subr.mxu0 0.0
    %964 = vmatpush1.msra.mxu0 %v153
    %965 = vmatprep.subr.mxu0 0.0
    %966 = vmatpush1.msra.mxu0 %v154
    %967 = vmatprep.subr.mxu0 0.0
    %968 = vmatpush1.msra.mxu0 %v155
    %969 = vmatprep.subr.mxu0 0.0
    %970 = vmatpush1.msra.mxu0 %v156
    %971 = vmatprep.subr.mxu0 0.0
    %972 = vmatpush1.msra.mxu0 %v157
    %973 = vmatprep.subr.mxu0 0.0
    %974 = vmatpush1.msra.mxu0 %v158
    %975 = vmatprep.subr.mxu0 0.0
    %976 = vmatpush1.msra.mxu0 %v159
    %977 = vmatprep.subr.mxu0 0.0
    %978 = vmatpush1.msra.mxu0 %v160
    %979 = vmatprep.subr.mxu0 0.0
    %980 = vmatpush1.msra.mxu0 %v161
    %981 = vmatprep.subr.mxu0 0.0
    %982 = vmatpush1.msra.mxu0 %v162
    %983 = vmatprep.subr.mxu0 0.0
    %984 = vmatpush1.msra.mxu0 %v163
    %985 = vmatprep.subr.mxu0 0.0
    %986 = vmatpush1.msra.mxu0 %v164
    %987 = vmatprep.subr.mxu0 0.0
    %988 = vmatpush1.msra.mxu0 %v165
    %989 = vmatprep.subr.mxu0 0.0
    %990 = vmatpush1.msra.mxu0 %v166
    %991 = vmatprep.subr.mxu0 0.0
    %992 = vmatpush1.msra.mxu0 %v167
    %993 = vmatprep.subr.mxu0 0.0
    %994 = vmatpush1.msra.mxu0 %v168
    %995 = vmatprep.subr.mxu0 0.0
    %996 = vmatpush1.msra.mxu0 %v169
    %997 = vmatprep.subr.mxu0 0.0
    %998 = vmatpush1.msra.mxu0 %v170
    %999 = vmatprep.subr.mxu0 0.0
    %1000 = vmatpush1.msra.mxu0 %v171
    %1001 = vmatprep.subr.mxu0 0.0
    %1002 = vmatpush1.msra.mxu0 %v172
    %1003 = vmatprep.subr.mxu0 0.0
    %1004 = vmatpush1.msra.mxu0 %v173
    %1005 = vmatprep.subr.mxu0 0.0
    %1006 = vmatpush1.msra.mxu0 %v174
    %1007 = vmatprep.subr.mxu0 0.0
    %1008 = vmatpush1.msra.mxu0 %v175
    %1009 = vmatprep.subr.mxu0 0.0
    %1010 = vmatpush1.msra.mxu0 %v176
    %1011 = vmatprep.subr.mxu0 0.0
    %1012 = vmatpush1.msra.mxu0 %v177
    %1013 = vmatprep.subr.mxu0 0.0
    %1014 = vmatpush1.msra.mxu0 %v178
    %1015 = vmatprep.subr.mxu0 0.0
    %1016 = vmatpush1.msra.mxu0 %v179
    %1017 = vmatprep.subr.mxu0 0.0
    %1018 = vmatpush1.msra.mxu0 %v180
    %1019 = vmatprep.subr.mxu0 0.0
    %1020 = vmatpush1.msra.mxu0 %v181
    %1021 = vmatprep.subr.mxu0 0.0
    %1022 = vmatpush1.msra.mxu0 %v182
    %1023 = vmatprep.subr.mxu0 0.0
    %1024 = vmatpush1.msra.mxu0 %v183
    %1025 = vmatprep.subr.mxu0 0.0
    %1026 = vmatpush1.msra.mxu0 %v184
    %1027 = vmatprep.mubr.f32.mxu0 %v758
    %1028 = vmatmul.mubr.f32.gmra.mrb[0].mxu0 %v962
    %v1029 = vpop.f32.mrb[0].mxu0
    %v1030 = vadd.f32 %v197, %v1029
    %v1031 = vpop.f32.mrb[0].mxu0
    %1032 = vdwg.mxu0
    %v1033 = vmax.f32 %v1030, 0.0
    %v1034 = vld [vmem:[#allocation5 + $0x3] sm:$0x1]
    %v1035 = vld [vmem:[#allocation5 + $0xb] sm:$0x1]
    %v1036 = vld [vmem:[#allocation5 + $0x13] sm:$0x1]
    %v1037 = vld [vmem:[#allocation5 + $0x1b] sm:$0x1]
    %v1038 = vld [vmem:[#allocation5 + $0x23] sm:$0x1]
    %v1039 = vld [vmem:[#allocation5 + $0x2b] sm:$0x1]
    %v1040 = vld [vmem:[#allocation5 + $0x33] sm:$0x1]
    %v1041 = vld [vmem:[#allocation5 + $0x3b] sm:$0x1]
    %1042 = vmatprep.subr.mxu0 0.0
    %1043 = vmatpush1.msra.mxu0 %v105
    %1044 = vmatprep.subr.mxu0 0.0
    %1045 = vmatpush1.msra.mxu0 %v106
    %1046 = vmatprep.subr.mxu0 0.0
    %1047 = vmatpush1.msra.mxu0 %v107
    %1048 = vmatprep.subr.mxu0 0.0
    %1049 = vmatpush1.msra.mxu0 %v108
    %1050 = vmatprep.subr.mxu0 0.0
    %1051 = vmatpush1.msra.mxu0 %v109
    %1052 = vmatprep.subr.mxu0 0.0
    %1053 = vmatpush1.msra.mxu0 %v110
    %1054 = vmatprep.subr.mxu0 0.0
    %1055 = vmatpush1.msra.mxu0 %v111
    %1056 = vmatprep.subr.mxu0 0.0
    %1057 = vmatpush1.msra.mxu0 %v112
    %1058 = vmatprep.subr.mxu0 0.0
    %1059 = vmatpush1.msra.mxu0 %v113
    %1060 = vmatprep.subr.mxu0 0.0
    %1061 = vmatpush1.msra.mxu0 %v114
    %1062 = vmatprep.subr.mxu0 0.0
    %1063 = vmatpush1.msra.mxu0 %v115
    %1064 = vmatprep.subr.mxu0 0.0
    %1065 = vmatpush1.msra.mxu0 %v116
    %1066 = vmatprep.subr.mxu0 0.0
    %1067 = vmatpush1.msra.mxu0 %v117
    %1068 = vmatprep.subr.mxu0 0.0
    %1069 = vmatpush1.msra.mxu0 %v118
    %1070 = vmatprep.subr.mxu0 0.0
    %1071 = vmatpush1.msra.mxu0 %v119
    %1072 = vmatprep.subr.mxu0 0.0
    %1073 = vmatpush1.msra.mxu0 %v120
    %1074 = vmatprep.subr.mxu0 0.0
    %1075 = vmatpush1.msra.mxu0 0.0
    %1076 = vmatprep.subr.mxu0 0.0
    %1077 = vmatpush1.msra.mxu0 0.0
    %1078 = vmatprep.subr.mxu0 0.0
    %1079 = vmatpush1.msra.mxu0 0.0
    %1080 = vmatprep.subr.mxu0 0.0
    %1081 = vmatpush1.msra.mxu0 0.0
    %1082 = vmatprep.subr.mxu0 0.0
    %1083 = vmatpush1.msra.mxu0 0.0
    %1084 = vmatprep.subr.mxu0 0.0
    %1085 = vmatpush1.msra.mxu0 0.0
    %1086 = vmatprep.subr.mxu0 0.0
    %1087 = vmatpush1.msra.mxu0 0.0
    %1088 = vmatprep.subr.mxu0 0.0
    %1089 = vmatpush1.msra.mxu0 0.0
    %1090 = vmatprep.subr.mxu0 0.0
    %1091 = vmatpush1.msra.mxu0 0.0
    %1092 = vmatprep.subr.mxu0 0.0
    %1093 = vmatpush1.msra.mxu0 0.0
    %1094 = vmatprep.subr.mxu0 0.0
    %1095 = vmatpush1.msra.mxu0 0.0
    %1096 = vmatprep.subr.mxu0 0.0
    %1097 = vmatpush1.msra.mxu0 0.0
    %1098 = vmatprep.subr.mxu0 0.0
    %1099 = vmatpush1.msra.mxu0 0.0
    %1100 = vmatprep.subr.mxu0 0.0
    %1101 = vmatpush1.msra.mxu0 0.0
    %1102 = vmatprep.subr.mxu0 0.0
    %1103 = vmatpush1.msra.mxu0 0.0
    %1104 = vmatprep.subr.mxu0 0.0
    %1105 = vmatpush1.msra.mxu0 0.0
    %1106 = vmatprep.mubr.f32.mxu0 0.0
    %1107 = vmatmul.mubr.f32.gmra.mrb[0].mxu0 %v890
    %v1108 = vpop.f32.mrb[0].mxu0
    %v1109 = vadd.f32 0.0, %v1108
    %v1110 = vpop.f32.mrb[0].mxu0
    %1111 = vdwg.mxu0
    %v1113 = vrot.slane %v1109, 1
    %v1114 = vrot.slane %v1109, 2
    %v1115 = vrot.slane %v1109, 3
    %v1116 = vrot.slane %v1109, 4
    %v1117 = vrot.slane %v1109, 5
    %v1118 = vrot.slane %v1109, 6
    %v1119 = vrot.slane %v1109, 7
    %v1128 = vadd.f32 %v1034, %v1109
    %v1129 = vadd.f32 %v1035, %v1113
    %v1130 = vadd.f32 %v1036, %v1114
    %v1131 = vadd.f32 %v1037, %v1115
    %v1132 = vadd.f32 %v1038, %v1116
    %v1133 = vadd.f32 %v1039, %v1117
    %v1134 = vadd.f32 %v1040, %v1118
    %v1135 = vadd.f32 %v1041, %v1119
    %v1136 = vmax.f32 %v1128, 0.0
    %v1137 = vmax.f32 %v1129, 0.0
    %v1138 = vmax.f32 %v1130, 0.0
    %v1139 = vmax.f32 %v1131, 0.0
    %v1140 = vmax.f32 %v1132, 0.0
    %v1141 = vmax.f32 %v1133, 0.0
    %v1142 = vmax.f32 %v1134, 0.0
    %v1143 = vmax.f32 %v1135, 0.0
    %v1152 = vrot.slane %v1137, 7
    %v1153 = vsel %vm321, %v1152, %v1136
    %v1154 = vrot.slane %v1138, 6
    %v1155 = vsel %vm324, %v1154, %v1153
    %v1156 = vrot.slane %v1139, 5
    %v1157 = vsel %vm327, %v1156, %v1155
    %v1158 = vrot.slane %v1140, 4
    %v1159 = vsel %vm330, %v1158, %v1157
    %v1160 = vrot.slane %v1141, 3
    %v1161 = vsel %vm333, %v1160, %v1159
    %v1162 = vrot.slane %v1142, 2
    %v1163 = vsel %vm336, %v1162, %v1161
    %v1164 = vrot.slane %v1143, 1
    %v1165 = vsel %vm339, %v1164, %v1163
    %1167 = vmatprep.subr.mxu0 0.0
    %1168 = vmatpush1.msra.mxu0 %v121
    %1169 = vmatprep.subr.mxu0 0.0
    %1170 = vmatpush1.msra.mxu0 %v122
    %1171 = vmatprep.subr.mxu0 0.0
    %1172 = vmatpush1.msra.mxu0 %v123
    %1173 = vmatprep.subr.mxu0 0.0
    %1174 = vmatpush1.msra.mxu0 %v124
    %1175 = vmatprep.subr.mxu0 0.0
    %1176 = vmatpush1.msra.mxu0 %v125
    %1177 = vmatprep.subr.mxu0 0.0
    %1178 = vmatpush1.msra.mxu0 %v126
    %1179 = vmatprep.subr.mxu0 0.0
    %1180 = vmatpush1.msra.mxu0 %v127
    %1181 = vmatprep.subr.mxu0 0.0
    %1182 = vmatpush1.msra.mxu0 %v128
    %1183 = vmatprep.subr.mxu0 0.0
    %1184 = vmatpush1.msra.mxu0 %v129
    %1185 = vmatprep.subr.mxu0 0.0
    %1186 = vmatpush1.msra.mxu0 %v130
    %1187 = vmatprep.subr.mxu0 0.0
    %1188 = vmatpush1.msra.mxu0 %v131
    %1189 = vmatprep.subr.mxu0 0.0
    %1190 = vmatpush1.msra.mxu0 %v132
    %1191 = vmatprep.subr.mxu0 0.0
    %1192 = vmatpush1.msra.mxu0 %v133
    %1193 = vmatprep.subr.mxu0 0.0
    %1194 = vmatpush1.msra.mxu0 %v134
    %1195 = vmatprep.subr.mxu0 0.0
    %1196 = vmatpush1.msra.mxu0 %v135
    %1197 = vmatprep.subr.mxu0 0.0
    %1198 = vmatpush1.msra.mxu0 %v136
    %1199 = vmatprep.subr.mxu0 0.0
    %1200 = vmatpush1.msra.mxu0 %v137
    %1201 = vmatprep.subr.mxu0 0.0
    %1202 = vmatpush1.msra.mxu0 %v138
    %1203 = vmatprep.subr.mxu0 0.0
    %1204 = vmatpush1.msra.mxu0 %v139
    %1205 = vmatprep.subr.mxu0 0.0
    %1206 = vmatpush1.msra.mxu0 %v140
    %1207 = vmatprep.subr.mxu0 0.0
    %1208 = vmatpush1.msra.mxu0 %v141
    %1209 = vmatprep.subr.mxu0 0.0
    %1210 = vmatpush1.msra.mxu0 %v142
    %1211 = vmatprep.subr.mxu0 0.0
    %1212 = vmatpush1.msra.mxu0 %v143
    %1213 = vmatprep.subr.mxu0 0.0
    %1214 = vmatpush1.msra.mxu0 %v144
    %1215 = vmatprep.subr.mxu0 0.0
    %1216 = vmatpush1.msra.mxu0 %v145
    %1217 = vmatprep.subr.mxu0 0.0
    %1218 = vmatpush1.msra.mxu0 %v146
    %1219 = vmatprep.subr.mxu0 0.0
    %1220 = vmatpush1.msra.mxu0 %v147
    %1221 = vmatprep.subr.mxu0 0.0
    %1222 = vmatpush1.msra.mxu0 %v148
    %1223 = vmatprep.subr.mxu0 0.0
    %1224 = vmatpush1.msra.mxu0 %v149
    %1225 = vmatprep.subr.mxu0 0.0
    %1226 = vmatpush1.msra.mxu0 %v150
    %1227 = vmatprep.subr.mxu0 0.0
    %1228 = vmatpush1.msra.mxu0 %v151
    %1229 = vmatprep.subr.mxu0 0.0
    %1230 = vmatpush1.msra.mxu0 %v152
    %1231 = vmatprep.mubr.f32.mxu0 %v962
    %1232 = vmatmul.mubr.f32.gmra.mrb[0].mxu0 %v1165
    %v1233 = vpop.f32.mrb[0].mxu0
    %v1234 = vadd.f32 %v190, %v1233
    %v1235 = vpop.f32.mrb[0].mxu0
    %1236 = vdwg.mxu0
    %v1237 = vmax.f32 %v1234, 0.0
    %1238 = vmatprep.subr.mxu0 0.0
    %1239 = vmatpush1.msra.mxu0 %v153
    %1240 = vmatprep.subr.mxu0 0.0
    %1241 = vmatpush1.msra.mxu0 %v154
    %1242 = vmatprep.subr.mxu0 0.0
    %1243 = vmatpush1.msra.mxu0 %v155
    %1244 = vmatprep.subr.mxu0 0.0
    %1245 = vmatpush1.msra.mxu0 %v156
    %1246 = vmatprep.subr.mxu0 0.0
    %1247 = vmatpush1.msra.mxu0 %v157
    %1248 = vmatprep.subr.mxu0 0.0
    %1249 = vmatpush1.msra.mxu0 %v158
    %1250 = vmatprep.subr.mxu0 0.0
    %1251 = vmatpush1.msra.mxu0 %v159
    %1252 = vmatprep.subr.mxu0 0.0
    %1253 = vmatpush1.msra.mxu0 %v160
    %1254 = vmatprep.subr.mxu0 0.0
    %1255 = vmatpush1.msra.mxu0 %v161
    %1256 = vmatprep.subr.mxu0 0.0
    %1257 = vmatpush1.msra.mxu0 %v162
    %1258 = vmatprep.subr.mxu0 0.0
    %1259 = vmatpush1.msra.mxu0 %v163
    %1260 = vmatprep.subr.mxu0 0.0
    %1261 = vmatpush1.msra.mxu0 %v164
    %1262 = vmatprep.subr.mxu0 0.0
    %1263 = vmatpush1.msra.mxu0 %v165
    %1264 = vmatprep.subr.mxu0 0.0
    %1265 = vmatpush1.msra.mxu0 %v166
    %1266 = vmatprep.subr.mxu0 0.0
    %1267 = vmatpush1.msra.mxu0 %v167
    %1268 = vmatprep.subr.mxu0 0.0
    %1269 = vmatpush1.msra.mxu0 %v168
    %1270 = vmatprep.subr.mxu0 0.0
    %1271 = vmatpush1.msra.mxu0 %v169
    %1272 = vmatprep.subr.mxu0 0.0
    %1273 = vmatpush1.msra.mxu0 %v170
    %1274 = vmatprep.subr.mxu0 0.0
    %1275 = vmatpush1.msra.mxu0 %v171
    %1276 = vmatprep.subr.mxu0 0.0
    %1277 = vmatpush1.msra.mxu0 %v172
    %1278 = vmatprep.subr.mxu0 0.0
    %1279 = vmatpush1.msra.mxu0 %v173
    %1280 = vmatprep.subr.mxu0 0.0
    %1281 = vmatpush1.msra.mxu0 %v174
    %1282 = vmatprep.subr.mxu0 0.0
    %1283 = vmatpush1.msra.mxu0 %v175
    %1284 = vmatprep.subr.mxu0 0.0
    %1285 = vmatpush1.msra.mxu0 %v176
    %1286 = vmatprep.subr.mxu0 0.0
    %1287 = vmatpush1.msra.mxu0 %v177
    %1288 = vmatprep.subr.mxu0 0.0
    %1289 = vmatpush1.msra.mxu0 %v178
    %1290 = vmatprep.subr.mxu0 0.0
    %1291 = vmatpush1.msra.mxu0 %v179
    %1292 = vmatprep.subr.mxu0 0.0
    %1293 = vmatpush1.msra.mxu0 %v180
    %1294 = vmatprep.subr.mxu0 0.0
    %1295 = vmatpush1.msra.mxu0 %v181
    %1296 = vmatprep.subr.mxu0 0.0
    %1297 = vmatpush1.msra.mxu0 %v182
    %1298 = vmatprep.subr.mxu0 0.0
    %1299 = vmatpush1.msra.mxu0 %v183
    %1300 = vmatprep.subr.mxu0 0.0
    %1301 = vmatpush1.msra.mxu0 %v184
    %1302 = vmatprep.mubr.f32.mxu0 %v1033
    %1303 = vmatmul.mubr.f32.gmra.mrb[0].mxu0 %v1237
    %v1304 = vpop.f32.mrb[0].mxu0
    %v1305 = vadd.f32 %v197, %v1304
    %v1306 = vpop.f32.mrb[0].mxu0
    %1307 = vdwg.mxu0
    %v1308 = vmax.f32 %v1305, 0.0
    %v1309 = vld [vmem:[#allocation5 + $0x4] sm:$0x1]
    %v1310 = vld [vmem:[#allocation5 + $0xc] sm:$0x1]
    %v1311 = vld [vmem:[#allocation5 + $0x14] sm:$0x1]
    %v1312 = vld [vmem:[#allocation5 + $0x1c] sm:$0x1]
    %v1313 = vld [vmem:[#allocation5 + $0x24] sm:$0x1]
    %v1314 = vld [vmem:[#allocation5 + $0x2c] sm:$0x1]
    %v1315 = vld [vmem:[#allocation5 + $0x34] sm:$0x1]
    %v1316 = vld [vmem:[#allocation5 + $0x3c] sm:$0x1]
    %1317 = vmatprep.subr.mxu0 0.0
    %1318 = vmatpush1.msra.mxu0 %v105
    %1319 = vmatprep.subr.mxu0 0.0
    %1320 = vmatpush1.msra.mxu0 %v106
    %1321 = vmatprep.subr.mxu0 0.0
    %1322 = vmatpush1.msra.mxu0 %v107
    %1323 = vmatprep.subr.mxu0 0.0
    %1324 = vmatpush1.msra.mxu0 %v108
    %1325 = vmatprep.subr.mxu0 0.0
    %1326 = vmatpush1.msra.mxu0 %v109
    %1327 = vmatprep.subr.mxu0 0.0
    %1328 = vmatpush1.msra.mxu0 %v110
    %1329 = vmatprep.subr.mxu0 0.0
    %1330 = vmatpush1.msra.mxu0 %v111
    %1331 = vmatprep.subr.mxu0 0.0
    %1332 = vmatpush1.msra.mxu0 %v112
    %1333 = vmatprep.subr.mxu0 0.0
    %1334 = vmatpush1.msra.mxu0 %v113
    %1335 = vmatprep.subr.mxu0 0.0
    %1336 = vmatpush1.msra.mxu0 %v114
    %1337 = vmatprep.subr.mxu0 0.0
    %1338 = vmatpush1.msra.mxu0 %v115
    %1339 = vmatprep.subr.mxu0 0.0
    %1340 = vmatpush1.msra.mxu0 %v116
    %1341 = vmatprep.subr.mxu0 0.0
    %1342 = vmatpush1.msra.mxu0 %v117
    %1343 = vmatprep.subr.mxu0 0.0
    %1344 = vmatpush1.msra.mxu0 %v118
    %1345 = vmatprep.subr.mxu0 0.0
    %1346 = vmatpush1.msra.mxu0 %v119
    %1347 = vmatprep.subr.mxu0 0.0
    %1348 = vmatpush1.msra.mxu0 %v120
    %1349 = vmatprep.subr.mxu0 0.0
    %1350 = vmatpush1.msra.mxu0 0.0
    %1351 = vmatprep.subr.mxu0 0.0
    %1352 = vmatpush1.msra.mxu0 0.0
    %1353 = vmatprep.subr.mxu0 0.0
    %1354 = vmatpush1.msra.mxu0 0.0
    %1355 = vmatprep.subr.mxu0 0.0
    %1356 = vmatpush1.msra.mxu0 0.0
    %1357 = vmatprep.subr.mxu0 0.0
    %1358 = vmatpush1.msra.mxu0 0.0
    %1359 = vmatprep.subr.mxu0 0.0
    %1360 = vmatpush1.msra.mxu0 0.0
    %1361 = vmatprep.subr.mxu0 0.0
    %1362 = vmatpush1.msra.mxu0 0.0
    %1363 = vmatprep.subr.mxu0 0.0
    %1364 = vmatpush1.msra.mxu0 0.0
    %1365 = vmatprep.subr.mxu0 0.0
    %1366 = vmatpush1.msra.mxu0 0.0
    %1367 = vmatprep.subr.mxu0 0.0
    %1368 = vmatpush1.msra.mxu0 0.0
    %1369 = vmatprep.subr.mxu0 0.0
    %1370 = vmatpush1.msra.mxu0 0.0
    %1371 = vmatprep.subr.mxu0 0.0
    %1372 = vmatpush1.msra.mxu0 0.0
    %1373 = vmatprep.subr.mxu0 0.0
    %1374 = vmatpush1.msra.mxu0 0.0
    %1375 = vmatprep.subr.mxu0 0.0
    %1376 = vmatpush1.msra.mxu0 0.0
    %1377 = vmatprep.subr.mxu0 0.0
    %1378 = vmatpush1.msra.mxu0 0.0
    %1379 = vmatprep.subr.mxu0 0.0
    %1380 = vmatpush1.msra.mxu0 0.0
    %1381 = vmatprep.mubr.f32.mxu0 0.0
    %1382 = vmatmul.mubr.f32.gmra.mrb[0].mxu0 %v1165
    %v1383 = vpop.f32.mrb[0].mxu0
    %v1384 = vadd.f32 0.0, %v1383
    %v1385 = vpop.f32.mrb[0].mxu0
    %1386 = vdwg.mxu0
    %v1388 = vrot.slane %v1384, 1
    %v1389 = vrot.slane %v1384, 2
    %v1390 = vrot.slane %v1384, 3
    %v1391 = vrot.slane %v1384, 4
    %v1392 = vrot.slane %v1384, 5
    %v1393 = vrot.slane %v1384, 6
    %v1394 = vrot.slane %v1384, 7
    %v1403 = vadd.f32 %v1309, %v1384
    %v1404 = vadd.f32 %v1310, %v1388
    %v1405 = vadd.f32 %v1311, %v1389
    %v1406 = vadd.f32 %v1312, %v1390
    %v1407 = vadd.f32 %v1313, %v1391
    %v1408 = vadd.f32 %v1314, %v1392
    %v1409 = vadd.f32 %v1315, %v1393
    %v1410 = vadd.f32 %v1316, %v1394
    %v1411 = vmax.f32 %v1403, 0.0
    %v1412 = vmax.f32 %v1404, 0.0
    %v1413 = vmax.f32 %v1405, 0.0
    %v1414 = vmax.f32 %v1406, 0.0
    %v1415 = vmax.f32 %v1407, 0.0
    %v1416 = vmax.f32 %v1408, 0.0
    %v1417 = vmax.f32 %v1409, 0.0
    %v1418 = vmax.f32 %v1410, 0.0
    %v1427 = vrot.slane %v1412, 7
    %v1428 = vsel %vm321, %v1427, %v1411
    %v1429 = vrot.slane %v1413, 6
    %v1430 = vsel %vm324, %v1429, %v1428
    %v1431 = vrot.slane %v1414, 5
    %v1432 = vsel %vm327, %v1431, %v1430
    %v1433 = vrot.slane %v1415, 4
    %v1434 = vsel %vm330, %v1433, %v1432
    %v1435 = vrot.slane %v1416, 3
    %v1436 = vsel %vm333, %v1435, %v1434
    %v1437 = vrot.slane %v1417, 2
    %v1438 = vsel %vm336, %v1437, %v1436
    %v1439 = vrot.slane %v1418, 1
    %v1440 = vsel %vm339, %v1439, %v1438
    %1442 = vmatprep.subr.mxu0 0.0
    %1443 = vmatpush1.msra.mxu0 %v121
    %1444 = vmatprep.subr.mxu0 0.0
    %1445 = vmatpush1.msra.mxu0 %v122
    %1446 = vmatprep.subr.mxu0 0.0
    %1447 = vmatpush1.msra.mxu0 %v123
    %1448 = vmatprep.subr.mxu0 0.0
    %1449 = vmatpush1.msra.mxu0 %v124
    %1450 = vmatprep.subr.mxu0 0.0
    %1451 = vmatpush1.msra.mxu0 %v125
    %1452 = vmatprep.subr.mxu0 0.0
    %1453 = vmatpush1.msra.mxu0 %v126
    %1454 = vmatprep.subr.mxu0 0.0
    %1455 = vmatpush1.msra.mxu0 %v127
    %1456 = vmatprep.subr.mxu0 0.0
    %1457 = vmatpush1.msra.mxu0 %v128
    %1458 = vmatprep.subr.mxu0 0.0
    %1459 = vmatpush1.msra.mxu0 %v129
    %1460 = vmatprep.subr.mxu0 0.0
    %1461 = vmatpush1.msra.mxu0 %v130
    %1462 = vmatprep.subr.mxu0 0.0
    %1463 = vmatpush1.msra.mxu0 %v131
    %1464 = vmatprep.subr.mxu0 0.0
    %1465 = vmatpush1.msra.mxu0 %v132
    %1466 = vmatprep.subr.mxu0 0.0
    %1467 = vmatpush1.msra.mxu0 %v133
    %1468 = vmatprep.subr.mxu0 0.0
    %1469 = vmatpush1.msra.mxu0 %v134
    %1470 = vmatprep.subr.mxu0 0.0
    %1471 = vmatpush1.msra.mxu0 %v135
    %1472 = vmatprep.subr.mxu0 0.0
    %1473 = vmatpush1.msra.mxu0 %v136
    %1474 = vmatprep.subr.mxu0 0.0
    %1475 = vmatpush1.msra.mxu0 %v137
    %1476 = vmatprep.subr.mxu0 0.0
    %1477 = vmatpush1.msra.mxu0 %v138
    %1478 = vmatprep.subr.mxu0 0.0
    %1479 = vmatpush1.msra.mxu0 %v139
    %1480 = vmatprep.subr.mxu0 0.0
    %1481 = vmatpush1.msra.mxu0 %v140
    %1482 = vmatprep.subr.mxu0 0.0
    %1483 = vmatpush1.msra.mxu0 %v141
    %1484 = vmatprep.subr.mxu0 0.0
    %1485 = vmatpush1.msra.mxu0 %v142
    %1486 = vmatprep.subr.mxu0 0.0
    %1487 = vmatpush1.msra.mxu0 %v143
    %1488 = vmatprep.subr.mxu0 0.0
    %1489 = vmatpush1.msra.mxu0 %v144
    %1490 = vmatprep.subr.mxu0 0.0
    %1491 = vmatpush1.msra.mxu0 %v145
    %1492 = vmatprep.subr.mxu0 0.0
    %1493 = vmatpush1.msra.mxu0 %v146
    %1494 = vmatprep.subr.mxu0 0.0
    %1495 = vmatpush1.msra.mxu0 %v147
    %1496 = vmatprep.subr.mxu0 0.0
    %1497 = vmatpush1.msra.mxu0 %v148
    %1498 = vmatprep.subr.mxu0 0.0
    %1499 = vmatpush1.msra.mxu0 %v149
    %1500 = vmatprep.subr.mxu0 0.0
    %1501 = vmatpush1.msra.mxu0 %v150
    %1502 = vmatprep.subr.mxu0 0.0
    %1503 = vmatpush1.msra.mxu0 %v151
    %1504 = vmatprep.subr.mxu0 0.0
    %1505 = vmatpush1.msra.mxu0 %v152
    %1506 = vmatprep.mubr.f32.mxu0 %v1237
    %1507 = vmatmul.mubr.f32.gmra.mrb[0].mxu0 %v1440
    %v1508 = vpop.f32.mrb[0].mxu0
    %v1509 = vadd.f32 %v190, %v1508
    %v1510 = vpop.f32.mrb[0].mxu0
    %1511 = vdwg.mxu0
    %v1512 = vmax.f32 %v1509, 0.0
    %1513 = vmatprep.subr.mxu0 0.0
    %1514 = vmatpush1.msra.mxu0 %v153
    %1515 = vmatprep.subr.mxu0 0.0
    %1516 = vmatpush1.msra.mxu0 %v154
    %1517 = vmatprep.subr.mxu0 0.0
    %1518 = vmatpush1.msra.mxu0 %v155
    %1519 = vmatprep.subr.mxu0 0.0
    %1520 = vmatpush1.msra.mxu0 %v156
    %1521 = vmatprep.subr.mxu0 0.0
    %1522 = vmatpush1.msra.mxu0 %v157
    %1523 = vmatprep.subr.mxu0 0.0
    %1524 = vmatpush1.msra.mxu0 %v158
    %1525 = vmatprep.subr.mxu0 0.0
    %1526 = vmatpush1.msra.mxu0 %v159
    %1527 = vmatprep.subr.mxu0 0.0
    %1528 = vmatpush1.msra.mxu0 %v160
    %1529 = vmatprep.subr.mxu0 0.0
    %1530 = vmatpush1.msra.mxu0 %v161
    %1531 = vmatprep.subr.mxu0 0.0
    %1532 = vmatpush1.msra.mxu0 %v162
    %1533 = vmatprep.subr.mxu0 0.0
    %1534 = vmatpush1.msra.mxu0 %v163
    %1535 = vmatprep.subr.mxu0 0.0
    %1536 = vmatpush1.msra.mxu0 %v164
    %1537 = vmatprep.subr.mxu0 0.0
    %1538 = vmatpush1.msra.mxu0 %v165
    %1539 = vmatprep.subr.mxu0 0.0
    %1540 = vmatpush1.msra.mxu0 %v166
    %1541 = vmatprep.subr.mxu0 0.0
    %1542 = vmatpush1.msra.mxu0 %v167
    %1543 = vmatprep.subr.mxu0 0.0
    %1544 = vmatpush1.msra.mxu0 %v168
    %1545 = vmatprep.subr.mxu0 0.0
    %1546 = vmatpush1.msra.mxu0 %v169
    %1547 = vmatprep.subr.mxu0 0.0
    %1548 = vmatpush1.msra.mxu0 %v170
    %1549 = vmatprep.subr.mxu0 0.0
    %1550 = vmatpush1.msra.mxu0 %v171
    %1551 = vmatprep.subr.mxu0 0.0
    %1552 = vmatpush1.msra.mxu0 %v172
    %1553 = vmatprep.subr.mxu0 0.0
    %1554 = vmatpush1.msra.mxu0 %v173
    %1555 = vmatprep.subr.mxu0 0.0
    %1556 = vmatpush1.msra.mxu0 %v174
    %1557 = vmatprep.subr.mxu0 0.0
    %1558 = vmatpush1.msra.mxu0 %v175
    %1559 = vmatprep.subr.mxu0 0.0
    %1560 = vmatpush1.msra.mxu0 %v176
    %1561 = vmatprep.subr.mxu0 0.0
    %1562 = vmatpush1.msra.mxu0 %v177
    %1563 = vmatprep.subr.mxu0 0.0
    %1564 = vmatpush1.msra.mxu0 %v178
    %1565 = vmatprep.subr.mxu0 0.0
    %1566 = vmatpush1.msra.mxu0 %v179
    %1567 = vmatprep.subr.mxu0 0.0
    %1568 = vmatpush1.msra.mxu0 %v180
    %1569 = vmatprep.subr.mxu0 0.0
    %1570 = vmatpush1.msra.mxu0 %v181
    %1571 = vmatprep.subr.mxu0 0.0
    %1572 = vmatpush1.msra.mxu0 %v182
    %1573 = vmatprep.subr.mxu0 0.0
    %1574 = vmatpush1.msra.mxu0 %v183
    %1575 = vmatprep.subr.mxu0 0.0
    %1576 = vmatpush1.msra.mxu0 %v184
    %1577 = vmatprep.mubr.f32.mxu0 %v1308
    %1578 = vmatmul.mubr.f32.gmra.mrb[0].mxu0 %v1512
    %v1579 = vpop.f32.mrb[0].mxu0
    %v1580 = vadd.f32 %v197, %v1579
    %v1581 = vpop.f32.mrb[0].mxu0
    %1582 = vdwg.mxu0
    %v1583 = vmax.f32 %v1580, 0.0
    %v1584 = vld [vmem:[#allocation5 + $0x5] sm:$0x1]
    %v1585 = vld [vmem:[#allocation5 + $0xd] sm:$0x1]
    %v1586 = vld [vmem:[#allocation5 + $0x15] sm:$0x1]
    %v1587 = vld [vmem:[#allocation5 + $0x1d] sm:$0x1]
    %v1588 = vld [vmem:[#allocation5 + $0x25] sm:$0x1]
    %v1589 = vld [vmem:[#allocation5 + $0x2d] sm:$0x1]
    %v1590 = vld [vmem:[#allocation5 + $0x35] sm:$0x1]
    %v1591 = vld [vmem:[#allocation5 + $0x3d] sm:$0x1]
    %1592 = vmatprep.subr.mxu0 0.0
    %1593 = vmatpush1.msra.mxu0 %v105
    %1594 = vmatprep.subr.mxu0 0.0
    %1595 = vmatpush1.msra.mxu0 %v106
    %1596 = vmatprep.subr.mxu0 0.0
    %1597 = vmatpush1.msra.mxu0 %v107
    %1598 = vmatprep.subr.mxu0 0.0
    %1599 = vmatpush1.msra.mxu0 %v108
    %1600 = vmatprep.subr.mxu0 0.0
    %1601 = vmatpush1.msra.mxu0 %v109
    %1602 = vmatprep.subr.mxu0 0.0
    %1603 = vmatpush1.msra.mxu0 %v110
    %1604 = vmatprep.subr.mxu0 0.0
    %1605 = vmatpush1.msra.mxu0 %v111
    %1606 = vmatprep.subr.mxu0 0.0
    %1607 = vmatpush1.msra.mxu0 %v112
    %1608 = vmatprep.subr.mxu0 0.0
    %1609 = vmatpush1.msra.mxu0 %v113
    %1610 = vmatprep.subr.mxu0 0.0
    %1611 = vmatpush1.msra.mxu0 %v114
    %1612 = vmatprep.subr.mxu0 0.0
    %1613 = vmatpush1.msra.mxu0 %v115
    %1614 = vmatprep.subr.mxu0 0.0
    %1615 = vmatpush1.msra.mxu0 %v116
    %1616 = vmatprep.subr.mxu0 0.0
    %1617 = vmatpush1.msra.mxu0 %v117
    %1618 = vmatprep.subr.mxu0 0.0
    %1619 = vmatpush1.msra.mxu0 %v118
    %1620 = vmatprep.subr.mxu0 0.0
    %1621 = vmatpush1.msra.mxu0 %v119
    %1622 = vmatprep.subr.mxu0 0.0
    %1623 = vmatpush1.msra.mxu0 %v120
    %1624 = vmatprep.subr.mxu0 0.0
    %1625 = vmatpush1.msra.mxu0 0.0
    %1626 = vmatprep.subr.mxu0 0.0
    %1627 = vmatpush1.msra.mxu0 0.0
    %1628 = vmatprep.subr.mxu0 0.0
    %1629 = vmatpush1.msra.mxu0 0.0
    %1630 = vmatprep.subr.mxu0 0.0
    %1631 = vmatpush1.msra.mxu0 0.0
    %1632 = vmatprep.subr.mxu0 0.0
    %1633 = vmatpush1.msra.mxu0 0.0
    %1634 = vmatprep.subr.mxu0 0.0
    %1635 = vmatpush1.msra.mxu0 0.0
    %1636 = vmatprep.subr.mxu0 0.0
    %1637 = vmatpush1.msra.mxu0 0.0
    %1638 = vmatprep.subr.mxu0 0.0
    %1639 = vmatpush1.msra.mxu0 0.0
    %1640 = vmatprep.subr.mxu0 0.0
    %1641 = vmatpush1.msra.mxu0 0.0
    %1642 = vmatprep.subr.mxu0 0.0
    %1643 = vmatpush1.msra.mxu0 0.0
    %1644 = vmatprep.subr.mxu0 0.0
    %1645 = vmatpush1.msra.mxu0 0.0
    %1646 = vmatprep.subr.mxu0 0.0
    %1647 = vmatpush1.msra.mxu0 0.0
    %1648 = vmatprep.subr.mxu0 0.0
    %1649 = vmatpush1.msra.mxu0 0.0
    %1650 = vmatprep.subr.mxu0 0.0
    %1651 = vmatpush1.msra.mxu0 0.0
    %1652 = vmatprep.subr.mxu0 0.0
    %1653 = vmatpush1.msra.mxu0 0.0
    %1654 = vmatprep.subr.mxu0 0.0
    %1655 = vmatpush1.msra.mxu0 0.0
    %1656 = vmatprep.mubr.f32.mxu0 0.0
    %1657 = vmatmul.mubr.f32.gmra.mrb[0].mxu0 %v1440
    %v1658 = vpop.f32.mrb[0].mxu0
    %v1659 = vadd.f32 0.0, %v1658
    %v1660 = vpop.f32.mrb[0].mxu0
    %1661 = vdwg.mxu0
    %v1663 = vrot.slane %v1659, 1
    %v1664 = vrot.slane %v1659, 2
    %v1665 = vrot.slane %v1659, 3
    %v1666 = vrot.slane %v1659, 4
    %v1667 = vrot.slane %v1659, 5
    %v1668 = vrot.slane %v1659, 6
    %v1669 = vrot.slane %v1659, 7
    %v1678 = vadd.f32 %v1584, %v1659
    %v1679 = vadd.f32 %v1585, %v1663
    %v1680 = vadd.f32 %v1586, %v1664
    %v1681 = vadd.f32 %v1587, %v1665
    %v1682 = vadd.f32 %v1588, %v1666
    %v1683 = vadd.f32 %v1589, %v1667
    %v1684 = vadd.f32 %v1590, %v1668
    %v1685 = vadd.f32 %v1591, %v1669
    %v1686 = vmax.f32 %v1678, 0.0
    %v1687 = vmax.f32 %v1679, 0.0
    %v1688 = vmax.f32 %v1680, 0.0
    %v1689 = vmax.f32 %v1681, 0.0
    %v1690 = vmax.f32 %v1682, 0.0
    %v1691 = vmax.f32 %v1683, 0.0
    %v1692 = vmax.f32 %v1684, 0.0
    %v1693 = vmax.f32 %v1685, 0.0
    %v1702 = vrot.slane %v1687, 7
    %v1703 = vsel %vm321, %v1702, %v1686
    %v1704 = vrot.slane %v1688, 6
    %v1705 = vsel %vm324, %v1704, %v1703
    %v1706 = vrot.slane %v1689, 5
    %v1707 = vsel %vm327, %v1706, %v1705
    %v1708 = vrot.slane %v1690, 4
    %v1709 = vsel %vm330, %v1708, %v1707
    %v1710 = vrot.slane %v1691, 3
    %v1711 = vsel %vm333, %v1710, %v1709
    %v1712 = vrot.slane %v1692, 2
    %v1713 = vsel %vm336, %v1712, %v1711
    %v1714 = vrot.slane %v1693, 1
    %v1715 = vsel %vm339, %v1714, %v1713
    %1717 = vmatprep.subr.mxu0 0.0
    %1718 = vmatpush1.msra.mxu0 %v121
    %1719 = vmatprep.subr.mxu0 0.0
    %1720 = vmatpush1.msra.mxu0 %v122
    %1721 = vmatprep.subr.mxu0 0.0
    %1722 = vmatpush1.msra.mxu0 %v123
    %1723 = vmatprep.subr.mxu0 0.0
    %1724 = vmatpush1.msra.mxu0 %v124
    %1725 = vmatprep.subr.mxu0 0.0
    %1726 = vmatpush1.msra.mxu0 %v125
    %1727 = vmatprep.subr.mxu0 0.0
    %1728 = vmatpush1.msra.mxu0 %v126
    %1729 = vmatprep.subr.mxu0 0.0
    %1730 = vmatpush1.msra.mxu0 %v127
    %1731 = vmatprep.subr.mxu0 0.0
    %1732 = vmatpush1.msra.mxu0 %v128
    %1733 = vmatprep.subr.mxu0 0.0
    %1734 = vmatpush1.msra.mxu0 %v129
    %1735 = vmatprep.subr.mxu0 0.0
    %1736 = vmatpush1.msra.mxu0 %v130
    %1737 = vmatprep.subr.mxu0 0.0
    %1738 = vmatpush1.msra.mxu0 %v131
    %1739 = vmatprep.subr.mxu0 0.0
    %1740 = vmatpush1.msra.mxu0 %v132
    %1741 = vmatprep.subr.mxu0 0.0
    %1742 = vmatpush1.msra.mxu0 %v133
    %1743 = vmatprep.subr.mxu0 0.0
    %1744 = vmatpush1.msra.mxu0 %v134
    %1745 = vmatprep.subr.mxu0 0.0
    %1746 = vmatpush1.msra.mxu0 %v135
    %1747 = vmatprep.subr.mxu0 0.0
    %1748 = vmatpush1.msra.mxu0 %v136
    %1749 = vmatprep.subr.mxu0 0.0
    %1750 = vmatpush1.msra.mxu0 %v137
    %1751 = vmatprep.subr.mxu0 0.0
    %1752 = vmatpush1.msra.mxu0 %v138
    %1753 = vmatprep.subr.mxu0 0.0
    %1754 = vmatpush1.msra.mxu0 %v139
    %1755 = vmatprep.subr.mxu0 0.0
    %1756 = vmatpush1.msra.mxu0 %v140
    %1757 = vmatprep.subr.mxu0 0.0
    %1758 = vmatpush1.msra.mxu0 %v141
    %1759 = vmatprep.subr.mxu0 0.0
    %1760 = vmatpush1.msra.mxu0 %v142
    %1761 = vmatprep.subr.mxu0 0.0
    %1762 = vmatpush1.msra.mxu0 %v143
    %1763 = vmatprep.subr.mxu0 0.0
    %1764 = vmatpush1.msra.mxu0 %v144
    %1765 = vmatprep.subr.mxu0 0.0
    %1766 = vmatpush1.msra.mxu0 %v145
    %1767 = vmatprep.subr.mxu0 0.0
    %1768 = vmatpush1.msra.mxu0 %v146
    %1769 = vmatprep.subr.mxu0 0.0
    %1770 = vmatpush1.msra.mxu0 %v147
    %1771 = vmatprep.subr.mxu0 0.0
    %1772 = vmatpush1.msra.mxu0 %v148
    %1773 = vmatprep.subr.mxu0 0.0
    %1774 = vmatpush1.msra.mxu0 %v149
    %1775 = vmatprep.subr.mxu0 0.0
    %1776 = vmatpush1.msra.mxu0 %v150
    %1777 = vmatprep.subr.mxu0 0.0
    %1778 = vmatpush1.msra.mxu0 %v151
    %1779 = vmatprep.subr.mxu0 0.0
    %1780 = vmatpush1.msra.mxu0 %v152
    %1781 = vmatprep.mubr.f32.mxu0 %v1512
    %1782 = vmatmul.mubr.f32.gmra.mrb[0].mxu0 %v1715
    %v1783 = vpop.f32.mrb[0].mxu0
    %v1784 = vadd.f32 %v190, %v1783
    %v1785 = vpop.f32.mrb[0].mxu0
    %1786 = vdwg.mxu0
    %v1787 = vmax.f32 %v1784, 0.0
    %1788 = vmatprep.subr.mxu0 0.0
    %1789 = vmatpush1.msra.mxu0 %v153
    %1790 = vmatprep.subr.mxu0 0.0
    %1791 = vmatpush1.msra.mxu0 %v154
    %1792 = vmatprep.subr.mxu0 0.0
    %1793 = vmatpush1.msra.mxu0 %v155
    %1794 = vmatprep.subr.mxu0 0.0
    %1795 = vmatpush1.msra.mxu0 %v156
    %1796 = vmatprep.subr.mxu0 0.0
    %1797 = vmatpush1.msra.mxu0 %v157
    %1798 = vmatprep.subr.mxu0 0.0
    %1799 = vmatpush1.msra.mxu0 %v158
    %1800 = vmatprep.subr.mxu0 0.0
    %1801 = vmatpush1.msra.mxu0 %v159
    %1802 = vmatprep.subr.mxu0 0.0
    %1803 = vmatpush1.msra.mxu0 %v160
    %1804 = vmatprep.subr.mxu0 0.0
    %1805 = vmatpush1.msra.mxu0 %v161
    %1806 = vmatprep.subr.mxu0 0.0
    %1807 = vmatpush1.msra.mxu0 %v162
    %1808 = vmatprep.subr.mxu0 0.0
    %1809 = vmatpush1.msra.mxu0 %v163
    %1810 = vmatprep.subr.mxu0 0.0
    %1811 = vmatpush1.msra.mxu0 %v164
    %1812 = vmatprep.subr.mxu0 0.0
    %1813 = vmatpush1.msra.mxu0 %v165
    %1814 = vmatprep.subr.mxu0 0.0
    %1815 = vmatpush1.msra.mxu0 %v166
    %1816 = vmatprep.subr.mxu0 0.0
    %1817 = vmatpush1.msra.mxu0 %v167
    %1818 = vmatprep.subr.mxu0 0.0
    %1819 = vmatpush1.msra.mxu0 %v168
    %1820 = vmatprep.subr.mxu0 0.0
    %1821 = vmatpush1.msra.mxu0 %v169
    %1822 = vmatprep.subr.mxu0 0.0
    %1823 = vmatpush1.msra.mxu0 %v170
    %1824 = vmatprep.subr.mxu0 0.0
    %1825 = vmatpush1.msra.mxu0 %v171
    %1826 = vmatprep.subr.mxu0 0.0
    %1827 = vmatpush1.msra.mxu0 %v172
    %1828 = vmatprep.subr.mxu0 0.0
    %1829 = vmatpush1.msra.mxu0 %v173
    %1830 = vmatprep.subr.mxu0 0.0
    %1831 = vmatpush1.msra.mxu0 %v174
    %1832 = vmatprep.subr.mxu0 0.0
    %1833 = vmatpush1.msra.mxu0 %v175
    %1834 = vmatprep.subr.mxu0 0.0
    %1835 = vmatpush1.msra.mxu0 %v176
    %1836 = vmatprep.subr.mxu0 0.0
    %1837 = vmatpush1.msra.mxu0 %v177
    %1838 = vmatprep.subr.mxu0 0.0
    %1839 = vmatpush1.msra.mxu0 %v178
    %1840 = vmatprep.subr.mxu0 0.0
    %1841 = vmatpush1.msra.mxu0 %v179
    %1842 = vmatprep.subr.mxu0 0.0
    %1843 = vmatpush1.msra.mxu0 %v180
    %1844 = vmatprep.subr.mxu0 0.0
    %1845 = vmatpush1.msra.mxu0 %v181
    %1846 = vmatprep.subr.mxu0 0.0
    %1847 = vmatpush1.msra.mxu0 %v182
    %1848 = vmatprep.subr.mxu0 0.0
    %1849 = vmatpush1.msra.mxu0 %v183
    %1850 = vmatprep.subr.mxu0 0.0
    %1851 = vmatpush1.msra.mxu0 %v184
    %1852 = vmatprep.mubr.f32.mxu0 %v1583
    %1853 = vmatmul.mubr.f32.gmra.mrb[0].mxu0 %v1787
    %v1854 = vpop.f32.mrb[0].mxu0
    %v1855 = vadd.f32 %v197, %v1854
    %v1856 = vpop.f32.mrb[0].mxu0
    %1857 = vdwg.mxu0
    %v1858 = vmax.f32 %v1855, 0.0
    %v1859 = vld [vmem:[#allocation5 + $0x6] sm:$0x1]
    %v1860 = vld [vmem:[#allocation5 + $0xe] sm:$0x1]
    %v1861 = vld [vmem:[#allocation5 + $0x16] sm:$0x1]
    %v1862 = vld [vmem:[#allocation5 + $0x1e] sm:$0x1]
    %v1863 = vld [vmem:[#allocation5 + $0x26] sm:$0x1]
    %v1864 = vld [vmem:[#allocation5 + $0x2e] sm:$0x1]
    %v1865 = vld [vmem:[#allocation5 + $0x36] sm:$0x1]
    %v1866 = vld [vmem:[#allocation5 + $0x3e] sm:$0x1]
    %1867 = vmatprep.subr.mxu0 0.0
    %1868 = vmatpush1.msra.mxu0 %v105
    %1869 = vmatprep.subr.mxu0 0.0
    %1870 = vmatpush1.msra.mxu0 %v106
    %1871 = vmatprep.subr.mxu0 0.0
    %1872 = vmatpush1.msra.mxu0 %v107
    %1873 = vmatprep.subr.mxu0 0.0
    %1874 = vmatpush1.msra.mxu0 %v108
    %1875 = vmatprep.subr.mxu0 0.0
    %1876 = vmatpush1.msra.mxu0 %v109
    %1877 = vmatprep.subr.mxu0 0.0
    %1878 = vmatpush1.msra.mxu0 %v110
    %1879 = vmatprep.subr.mxu0 0.0
    %1880 = vmatpush1.msra.mxu0 %v111
    %1881 = vmatprep.subr.mxu0 0.0
    %1882 = vmatpush1.msra.mxu0 %v112
    %1883 = vmatprep.subr.mxu0 0.0
    %1884 = vmatpush1.msra.mxu0 %v113
    %1885 = vmatprep.subr.mxu0 0.0
    %1886 = vmatpush1.msra.mxu0 %v114
    %1887 = vmatprep.subr.mxu0 0.0
    %1888 = vmatpush1.msra.mxu0 %v115
    %1889 = vmatprep.subr.mxu0 0.0
    %1890 = vmatpush1.msra.mxu0 %v116
    %1891 = vmatprep.subr.mxu0 0.0
    %1892 = vmatpush1.msra.mxu0 %v117
    %1893 = vmatprep.subr.mxu0 0.0
    %1894 = vmatpush1.msra.mxu0 %v118
    %1895 = vmatprep.subr.mxu0 0.0
    %1896 = vmatpush1.msra.mxu0 %v119
    %1897 = vmatprep.subr.mxu0 0.0
    %1898 = vmatpush1.msra.mxu0 %v120
    %1899 = vmatprep.subr.mxu0 0.0
    %1900 = vmatpush1.msra.mxu0 0.0
    %1901 = vmatprep.subr.mxu0 0.0
    %1902 = vmatpush1.msra.mxu0 0.0
    %1903 = vmatprep.subr.mxu0 0.0
    %1904 = vmatpush1.msra.mxu0 0.0
    %1905 = vmatprep.subr.mxu0 0.0
    %1906 = vmatpush1.msra.mxu0 0.0
    %1907 = vmatprep.subr.mxu0 0.0
    %1908 = vmatpush1.msra.mxu0 0.0
    %1909 = vmatprep.subr.mxu0 0.0
    %1910 = vmatpush1.msra.mxu0 0.0
    %1911 = vmatprep.subr.mxu0 0.0
    %1912 = vmatpush1.msra.mxu0 0.0
    %1913 = vmatprep.subr.mxu0 0.0
    %1914 = vmatpush1.msra.mxu0 0.0
    %1915 = vmatprep.subr.mxu0 0.0
    %1916 = vmatpush1.msra.mxu0 0.0
    %1917 = vmatprep.subr.mxu0 0.0
    %1918 = vmatpush1.msra.mxu0 0.0
    %1919 = vmatprep.subr.mxu0 0.0
    %1920 = vmatpush1.msra.mxu0 0.0
    %1921 = vmatprep.subr.mxu0 0.0
    %1922 = vmatpush1.msra.mxu0 0.0
    %1923 = vmatprep.subr.mxu0 0.0
    %1924 = vmatpush1.msra.mxu0 0.0
    %1925 = vmatprep.subr.mxu0 0.0
    %1926 = vmatpush1.msra.mxu0 0.0
    %1927 = vmatprep.subr.mxu0 0.0
    %1928 = vmatpush1.msra.mxu0 0.0
    %1929 = vmatprep.subr.mxu0 0.0
    %1930 = vmatpush1.msra.mxu0 0.0
    %1931 = vmatprep.mubr.f32.mxu0 0.0
    %1932 = vmatmul.mubr.f32.gmra.mrb[0].mxu0 %v1715
    %v1933 = vpop.f32.mrb[0].mxu0
    %v1934 = vadd.f32 0.0, %v1933
    %v1935 = vpop.f32.mrb[0].mxu0
    %1936 = vdwg.mxu0
    %v1938 = vrot.slane %v1934, 1
    %v1939 = vrot.slane %v1934, 2
    %v1940 = vrot.slane %v1934, 3
    %v1941 = vrot.slane %v1934, 4
    %v1942 = vrot.slane %v1934, 5
    %v1943 = vrot.slane %v1934, 6
    %v1944 = vrot.slane %v1934, 7
    %v1953 = vadd.f32 %v1859, %v1934
    %v1954 = vadd.f32 %v1860, %v1938
    %v1955 = vadd.f32 %v1861, %v1939
    %v1956 = vadd.f32 %v1862, %v1940
    %v1957 = vadd.f32 %v1863, %v1941
    %v1958 = vadd.f32 %v1864, %v1942
    %v1959 = vadd.f32 %v1865, %v1943
    %v1960 = vadd.f32 %v1866, %v1944
    %v1961 = vmax.f32 %v1953, 0.0
    %v1962 = vmax.f32 %v1954, 0.0
    %v1963 = vmax.f32 %v1955, 0.0
    %v1964 = vmax.f32 %v1956, 0.0
    %v1965 = vmax.f32 %v1957, 0.0
    %v1966 = vmax.f32 %v1958, 0.0
    %v1967 = vmax.f32 %v1959, 0.0
    %v1968 = vmax.f32 %v1960, 0.0
    %v1977 = vrot.slane %v1962, 7
    %v1978 = vsel %vm321, %v1977, %v1961
    %v1979 = vrot.slane %v1963, 6
    %v1980 = vsel %vm324, %v1979, %v1978
    %v1981 = vrot.slane %v1964, 5
    %v1982 = vsel %vm327, %v1981, %v1980
    %v1983 = vrot.slane %v1965, 4
    %v1984 = vsel %vm330, %v1983, %v1982
    %v1985 = vrot.slane %v1966, 3
    %v1986 = vsel %vm333, %v1985, %v1984
    %v1987 = vrot.slane %v1967, 2
    %v1988 = vsel %vm336, %v1987, %v1986
    %v1989 = vrot.slane %v1968, 1
    %v1990 = vsel %vm339, %v1989, %v1988
    %1992 = vmatprep.subr.mxu0 0.0
    %1993 = vmatpush1.msra.mxu0 %v121
    %1994 = vmatprep.subr.mxu0 0.0
    %1995 = vmatpush1.msra.mxu0 %v122
    %1996 = vmatprep.subr.mxu0 0.0
    %1997 = vmatpush1.msra.mxu0 %v123
    %1998 = vmatprep.subr.mxu0 0.0
    %1999 = vmatpush1.msra.mxu0 %v124
    %2000 = vmatprep.subr.mxu0 0.0
    %2001 = vmatpush1.msra.mxu0 %v125
    %2002 = vmatprep.subr.mxu0 0.0
    %2003 = vmatpush1.msra.mxu0 %v126
    %2004 = vmatprep.subr.mxu0 0.0
    %2005 = vmatpush1.msra.mxu0 %v127
    %2006 = vmatprep.subr.mxu0 0.0
    %2007 = vmatpush1.msra.mxu0 %v128
    %2008 = vmatprep.subr.mxu0 0.0
    %2009 = vmatpush1.msra.mxu0 %v129
    %2010 = vmatprep.subr.mxu0 0.0
    %2011 = vmatpush1.msra.mxu0 %v130
    %2012 = vmatprep.subr.mxu0 0.0
    %2013 = vmatpush1.msra.mxu0 %v131
    %2014 = vmatprep.subr.mxu0 0.0
    %2015 = vmatpush1.msra.mxu0 %v132
    %2016 = vmatprep.subr.mxu0 0.0
    %2017 = vmatpush1.msra.mxu0 %v133
    %2018 = vmatprep.subr.mxu0 0.0
    %2019 = vmatpush1.msra.mxu0 %v134
    %2020 = vmatprep.subr.mxu0 0.0
    %2021 = vmatpush1.msra.mxu0 %v135
    %2022 = vmatprep.subr.mxu0 0.0
    %2023 = vmatpush1.msra.mxu0 %v136
    %2024 = vmatprep.subr.mxu0 0.0
    %2025 = vmatpush1.msra.mxu0 %v137
    %2026 = vmatprep.subr.mxu0 0.0
    %2027 = vmatpush1.msra.mxu0 %v138
    %2028 = vmatprep.subr.mxu0 0.0
    %2029 = vmatpush1.msra.mxu0 %v139
    %2030 = vmatprep.subr.mxu0 0.0
    %2031 = vmatpush1.msra.mxu0 %v140
    %2032 = vmatprep.subr.mxu0 0.0
    %2033 = vmatpush1.msra.mxu0 %v141
    %2034 = vmatprep.subr.mxu0 0.0
    %2035 = vmatpush1.msra.mxu0 %v142
    %2036 = vmatprep.subr.mxu0 0.0
    %2037 = vmatpush1.msra.mxu0 %v143
    %2038 = vmatprep.subr.mxu0 0.0
    %2039 = vmatpush1.msra.mxu0 %v144
    %2040 = vmatprep.subr.mxu0 0.0
    %2041 = vmatpush1.msra.mxu0 %v145
    %2042 = vmatprep.subr.mxu0 0.0
    %2043 = vmatpush1.msra.mxu0 %v146
    %2044 = vmatprep.subr.mxu0 0.0
    %2045 = vmatpush1.msra.mxu0 %v147
    %2046 = vmatprep.subr.mxu0 0.0
    %2047 = vmatpush1.msra.mxu0 %v148
    %2048 = vmatprep.subr.mxu0 0.0
    %2049 = vmatpush1.msra.mxu0 %v149
    %2050 = vmatprep.subr.mxu0 0.0
    %2051 = vmatpush1.msra.mxu0 %v150
    %2052 = vmatprep.subr.mxu0 0.0
    %2053 = vmatpush1.msra.mxu0 %v151
    %2054 = vmatprep.subr.mxu0 0.0
    %2055 = vmatpush1.msra.mxu0 %v152
    %2056 = vmatprep.mubr.f32.mxu0 %v1787
    %2057 = vmatmul.mubr.f32.gmra.mrb[0].mxu0 %v1990
    %v2058 = vpop.f32.mrb[0].mxu0
    %v2059 = vadd.f32 %v190, %v2058
    %v2060 = vpop.f32.mrb[0].mxu0
    %2061 = vdwg.mxu0
    %v2062 = vmax.f32 %v2059, 0.0
    %2063 = vmatprep.subr.mxu0 0.0
    %2064 = vmatpush1.msra.mxu0 %v153
    %2065 = vmatprep.subr.mxu0 0.0
    %2066 = vmatpush1.msra.mxu0 %v154
    %2067 = vmatprep.subr.mxu0 0.0
    %2068 = vmatpush1.msra.mxu0 %v155
    %2069 = vmatprep.subr.mxu0 0.0
    %2070 = vmatpush1.msra.mxu0 %v156
    %2071 = vmatprep.subr.mxu0 0.0
    %2072 = vmatpush1.msra.mxu0 %v157
    %2073 = vmatprep.subr.mxu0 0.0
    %2074 = vmatpush1.msra.mxu0 %v158
    %2075 = vmatprep.subr.mxu0 0.0
    %2076 = vmatpush1.msra.mxu0 %v159
    %2077 = vmatprep.subr.mxu0 0.0
    %2078 = vmatpush1.msra.mxu0 %v160
    %2079 = vmatprep.subr.mxu0 0.0
    %2080 = vmatpush1.msra.mxu0 %v161
    %2081 = vmatprep.subr.mxu0 0.0
    %2082 = vmatpush1.msra.mxu0 %v162
    %2083 = vmatprep.subr.mxu0 0.0
    %2084 = vmatpush1.msra.mxu0 %v163
    %2085 = vmatprep.subr.mxu0 0.0
    %2086 = vmatpush1.msra.mxu0 %v164
    %2087 = vmatprep.subr.mxu0 0.0
    %2088 = vmatpush1.msra.mxu0 %v165
    %2089 = vmatprep.subr.mxu0 0.0
    %2090 = vmatpush1.msra.mxu0 %v166
    %2091 = vmatprep.subr.mxu0 0.0
    %2092 = vmatpush1.msra.mxu0 %v167
    %2093 = vmatprep.subr.mxu0 0.0
    %2094 = vmatpush1.msra.mxu0 %v168
    %2095 = vmatprep.subr.mxu0 0.0
    %2096 = vmatpush1.msra.mxu0 %v169
    %2097 = vmatprep.subr.mxu0 0.0
    %2098 = vmatpush1.msra.mxu0 %v170
    %2099 = vmatprep.subr.mxu0 0.0
    %2100 = vmatpush1.msra.mxu0 %v171
    %2101 = vmatprep.subr.mxu0 0.0
    %2102 = vmatpush1.msra.mxu0 %v172
    %2103 = vmatprep.subr.mxu0 0.0
    %2104 = vmatpush1.msra.mxu0 %v173
    %2105 = vmatprep.subr.mxu0 0.0
    %2106 = vmatpush1.msra.mxu0 %v174
    %2107 = vmatprep.subr.mxu0 0.0
    %2108 = vmatpush1.msra.mxu0 %v175
    %2109 = vmatprep.subr.mxu0 0.0
    %2110 = vmatpush1.msra.mxu0 %v176
    %2111 = vmatprep.subr.mxu0 0.0
    %2112 = vmatpush1.msra.mxu0 %v177
    %2113 = vmatprep.subr.mxu0 0.0
    %2114 = vmatpush1.msra.mxu0 %v178
    %2115 = vmatprep.subr.mxu0 0.0
    %2116 = vmatpush1.msra.mxu0 %v179
    %2117 = vmatprep.subr.mxu0 0.0
    %2118 = vmatpush1.msra.mxu0 %v180
    %2119 = vmatprep.subr.mxu0 0.0
    %2120 = vmatpush1.msra.mxu0 %v181
    %2121 = vmatprep.subr.mxu0 0.0
    %2122 = vmatpush1.msra.mxu0 %v182
    %2123 = vmatprep.subr.mxu0 0.0
    %2124 = vmatpush1.msra.mxu0 %v183
    %2125 = vmatprep.subr.mxu0 0.0
    %2126 = vmatpush1.msra.mxu0 %v184
    %2127 = vmatprep.mubr.f32.mxu0 %v1858
    %2128 = vmatmul.mubr.f32.gmra.mrb[0].mxu0 %v2062
    %v2129 = vpop.f32.mrb[0].mxu0
    %v2130 = vadd.f32 %v197, %v2129
    %v2131 = vpop.f32.mrb[0].mxu0
    %2132 = vdwg.mxu0
    %v2133 = vmax.f32 %v2130, 0.0
    %v2134 = vld [vmem:[#allocation5 + $0x7] sm:$0x1]
    %v2135 = vld [vmem:[#allocation5 + $0xf] sm:$0x1]
    %v2136 = vld [vmem:[#allocation5 + $0x17] sm:$0x1]
    %v2137 = vld [vmem:[#allocation5 + $0x1f] sm:$0x1]
    %v2138 = vld [vmem:[#allocation5 + $0x27] sm:$0x1]
    %v2139 = vld [vmem:[#allocation5 + $0x2f] sm:$0x1]
    %v2140 = vld [vmem:[#allocation5 + $0x37] sm:$0x1]
    %v2141 = vld [vmem:[#allocation5 + $0x3f] sm:$0x1]
    %2142 = vmatprep.subr.mxu0 0.0
    %2143 = vmatpush1.msra.mxu0 %v105
    %2144 = vmatprep.subr.mxu0 0.0
    %2145 = vmatpush1.msra.mxu0 %v106
    %2146 = vmatprep.subr.mxu0 0.0
    %2147 = vmatpush1.msra.mxu0 %v107
    %2148 = vmatprep.subr.mxu0 0.0
    %2149 = vmatpush1.msra.mxu0 %v108
    %2150 = vmatprep.subr.mxu0 0.0
    %2151 = vmatpush1.msra.mxu0 %v109
    %2152 = vmatprep.subr.mxu0 0.0
    %2153 = vmatpush1.msra.mxu0 %v110
    %2154 = vmatprep.subr.mxu0 0.0
    %2155 = vmatpush1.msra.mxu0 %v111
    %2156 = vmatprep.subr.mxu0 0.0
    %2157 = vmatpush1.msra.mxu0 %v112
    %2158 = vmatprep.subr.mxu0 0.0
    %2159 = vmatpush1.msra.mxu0 %v113
    %2160 = vmatprep.subr.mxu0 0.0
    %2161 = vmatpush1.msra.mxu0 %v114
    %2162 = vmatprep.subr.mxu0 0.0
    %2163 = vmatpush1.msra.mxu0 %v115
    %2164 = vmatprep.subr.mxu0 0.0
    %2165 = vmatpush1.msra.mxu0 %v116
    %2166 = vmatprep.subr.mxu0 0.0
    %2167 = vmatpush1.msra.mxu0 %v117
    %2168 = vmatprep.subr.mxu0 0.0
    %2169 = vmatpush1.msra.mxu0 %v118
    %2170 = vmatprep.subr.mxu0 0.0
    %2171 = vmatpush1.msra.mxu0 %v119
    %2172 = vmatprep.subr.mxu0 0.0
    %2173 = vmatpush1.msra.mxu0 %v120
    %2174 = vmatprep.subr.mxu0 0.0
    %2175 = vmatpush1.msra.mxu0 0.0
    %2176 = vmatprep.subr.mxu0 0.0
    %2177 = vmatpush1.msra.mxu0 0.0
    %2178 = vmatprep.subr.mxu0 0.0
    %2179 = vmatpush1.msra.mxu0 0.0
    %2180 = vmatprep.subr.mxu0 0.0
    %2181 = vmatpush1.msra.mxu0 0.0
    %2182 = vmatprep.subr.mxu0 0.0
    %2183 = vmatpush1.msra.mxu0 0.0
    %2184 = vmatprep.subr.mxu0 0.0
    %2185 = vmatpush1.msra.mxu0 0.0
    %2186 = vmatprep.subr.mxu0 0.0
    %2187 = vmatpush1.msra.mxu0 0.0
    %2188 = vmatprep.subr.mxu0 0.0
    %2189 = vmatpush1.msra.mxu0 0.0
    %2190 = vmatprep.subr.mxu0 0.0
    %2191 = vmatpush1.msra.mxu0 0.0
    %2192 = vmatprep.subr.mxu0 0.0
    %2193 = vmatpush1.msra.mxu0 0.0
    %2194 = vmatprep.subr.mxu0 0.0
    %2195 = vmatpush1.msra.mxu0 0.0
    %2196 = vmatprep.subr.mxu0 0.0
    %2197 = vmatpush1.msra.mxu0 0.0
    %2198 = vmatprep.subr.mxu0 0.0
    %2199 = vmatpush1.msra.mxu0 0.0
    %2200 = vmatprep.subr.mxu0 0.0
    %2201 = vmatpush1.msra.mxu0 0.0
    %2202 = vmatprep.subr.mxu0 0.0
    %2203 = vmatpush1.msra.mxu0 0.0
    %2204 = vmatprep.subr.mxu0 0.0
    %2205 = vmatpush1.msra.mxu0 0.0
    %2206 = vmatprep.mubr.f32.mxu0 0.0
    %2207 = vmatmul.mubr.f32.gmra.mrb[0].mxu0 %v1990
    %v2208 = vpop.f32.mrb[0].mxu0
    %v2209 = vadd.f32 0.0, %v2208
    %v2210 = vpop.f32.mrb[0].mxu0
    %2211 = vdwg.mxu0
    %v2213 = vrot.slane %v2209, 1
    %v2214 = vrot.slane %v2209, 2
    %v2215 = vrot.slane %v2209, 3
    %v2216 = vrot.slane %v2209, 4
    %v2217 = vrot.slane %v2209, 5
    %v2218 = vrot.slane %v2209, 6
    %v2219 = vrot.slane %v2209, 7
    %v2228 = vadd.f32 %v2134, %v2209
    %v2229 = vadd.f32 %v2135, %v2213
    %v2230 = vadd.f32 %v2136, %v2214
    %v2231 = vadd.f32 %v2137, %v2215
    %v2232 = vadd.f32 %v2138, %v2216
    %v2233 = vadd.f32 %v2139, %v2217
    %v2234 = vadd.f32 %v2140, %v2218
    %v2235 = vadd.f32 %v2141, %v2219
    %v2236 = vmax.f32 %v2228, 0.0
    %v2237 = vmax.f32 %v2229, 0.0
    %v2238 = vmax.f32 %v2230, 0.0
    %v2239 = vmax.f32 %v2231, 0.0
    %v2240 = vmax.f32 %v2232, 0.0
    %v2241 = vmax.f32 %v2233, 0.0
    %v2242 = vmax.f32 %v2234, 0.0
    %v2243 = vmax.f32 %v2235, 0.0
    %v2252 = vrot.slane %v2237, 7
    %v2253 = vsel %vm321, %v2252, %v2236
    %v2254 = vrot.slane %v2238, 6
    %v2255 = vsel %vm324, %v2254, %v2253
    %v2256 = vrot.slane %v2239, 5
    %v2257 = vsel %vm327, %v2256, %v2255
    %v2258 = vrot.slane %v2240, 4
    %v2259 = vsel %vm330, %v2258, %v2257
    %v2260 = vrot.slane %v2241, 3
    %v2261 = vsel %vm333, %v2260, %v2259
    %v2262 = vrot.slane %v2242, 2
    %v2263 = vsel %vm336, %v2262, %v2261
    %v2264 = vrot.slane %v2243, 1
    %v2265 = vsel %vm339, %v2264, %v2263
    %2267 = vmatprep.subr.mxu0 0.0
    %2268 = vmatpush1.msra.mxu0 %v121
    %2269 = vmatprep.subr.mxu0 0.0
    %2270 = vmatpush1.msra.mxu0 %v122
    %2271 = vmatprep.subr.mxu0 0.0
    %2272 = vmatpush1.msra.mxu0 %v123
    %2273 = vmatprep.subr.mxu0 0.0
    %2274 = vmatpush1.msra.mxu0 %v124
    %2275 = vmatprep.subr.mxu0 0.0
    %2276 = vmatpush1.msra.mxu0 %v125
    %2277 = vmatprep.subr.mxu0 0.0
    %2278 = vmatpush1.msra.mxu0 %v126
    %2279 = vmatprep.subr.mxu0 0.0
    %2280 = vmatpush1.msra.mxu0 %v127
    %2281 = vmatprep.subr.mxu0 0.0
    %2282 = vmatpush1.msra.mxu0 %v128
    %2283 = vmatprep.subr.mxu0 0.0
    %2284 = vmatpush1.msra.mxu0 %v129
    %2285 = vmatprep.subr.mxu0 0.0
    %2286 = vmatpush1.msra.mxu0 %v130
    %2287 = vmatprep.subr.mxu0 0.0
    %2288 = vmatpush1.msra.mxu0 %v131
    %2289 = vmatprep.subr.mxu0 0.0
    %2290 = vmatpush1.msra.mxu0 %v132
    %2291 = vmatprep.subr.mxu0 0.0
    %2292 = vmatpush1.msra.mxu0 %v133
    %2293 = vmatprep.subr.mxu0 0.0
    %2294 = vmatpush1.msra.mxu0 %v134
    %2295 = vmatprep.subr.mxu0 0.0
    %2296 = vmatpush1.msra.mxu0 %v135
    %2297 = vmatprep.subr.mxu0 0.0
    %2298 = vmatpush1.msra.mxu0 %v136
    %2299 = vmatprep.subr.mxu0 0.0
    %2300 = vmatpush1.msra.mxu0 %v137
    %2301 = vmatprep.subr.mxu0 0.0
    %2302 = vmatpush1.msra.mxu0 %v138
    %2303 = vmatprep.subr.mxu0 0.0
    %2304 = vmatpush1.msra.mxu0 %v139
    %2305 = vmatprep.subr.mxu0 0.0
    %2306 = vmatpush1.msra.mxu0 %v140
    %2307 = vmatprep.subr.mxu0 0.0
    %2308 = vmatpush1.msra.mxu0 %v141
    %2309 = vmatprep.subr.mxu0 0.0
    %2310 = vmatpush1.msra.mxu0 %v142
    %2311 = vmatprep.subr.mxu0 0.0
    %2312 = vmatpush1.msra.mxu0 %v143
    %2313 = vmatprep.subr.mxu0 0.0
    %2314 = vmatpush1.msra.mxu0 %v144
    %2315 = vmatprep.subr.mxu0 0.0
    %2316 = vmatpush1.msra.mxu0 %v145
    %2317 = vmatprep.subr.mxu0 0.0
    %2318 = vmatpush1.msra.mxu0 %v146
    %2319 = vmatprep.subr.mxu0 0.0
    %2320 = vmatpush1.msra.mxu0 %v147
    %2321 = vmatprep.subr.mxu0 0.0
    %2322 = vmatpush1.msra.mxu0 %v148
    %2323 = vmatprep.subr.mxu0 0.0
    %2324 = vmatpush1.msra.mxu0 %v149
    %2325 = vmatprep.subr.mxu0 0.0
    %2326 = vmatpush1.msra.mxu0 %v150
    %2327 = vmatprep.subr.mxu0 0.0
    %2328 = vmatpush1.msra.mxu0 %v151
    %2329 = vmatprep.subr.mxu0 0.0
    %2330 = vmatpush1.msra.mxu0 %v152
    %2331 = vmatprep.mubr.f32.mxu0 %v2062
    %2332 = vmatmul.mubr.f32.gmra.mrb[0].mxu0 %v2265
    %v2333 = vpop.f32.mrb[0].mxu0
    %v2334 = vadd.f32 %v190, %v2333
    %v2335 = vpop.f32.mrb[0].mxu0
    %2336 = vdwg.mxu0
    %v2337 = vmax.f32 %v2334, 0.0
    %2338 = vmatprep.subr.mxu0 0.0
    %2339 = vmatpush1.msra.mxu0 %v153
    %2340 = vmatprep.subr.mxu0 0.0
    %2341 = vmatpush1.msra.mxu0 %v154
    %2342 = vmatprep.subr.mxu0 0.0
    %2343 = vmatpush1.msra.mxu0 %v155
    %2344 = vmatprep.subr.mxu0 0.0
    %2345 = vmatpush1.msra.mxu0 %v156
    %2346 = vmatprep.subr.mxu0 0.0
    %2347 = vmatpush1.msra.mxu0 %v157
    %2348 = vmatprep.subr.mxu0 0.0
    %2349 = vmatpush1.msra.mxu0 %v158
    %2350 = vmatprep.subr.mxu0 0.0
    %2351 = vmatpush1.msra.mxu0 %v159
    %2352 = vmatprep.subr.mxu0 0.0
    %2353 = vmatpush1.msra.mxu0 %v160
    %2354 = vmatprep.subr.mxu0 0.0
    %2355 = vmatpush1.msra.mxu0 %v161
    %2356 = vmatprep.subr.mxu0 0.0
    %2357 = vmatpush1.msra.mxu0 %v162
    %2358 = vmatprep.subr.mxu0 0.0
    %2359 = vmatpush1.msra.mxu0 %v163
    %2360 = vmatprep.subr.mxu0 0.0
    %2361 = vmatpush1.msra.mxu0 %v164
    %2362 = vmatprep.subr.mxu0 0.0
    %2363 = vmatpush1.msra.mxu0 %v165
    %2364 = vmatprep.subr.mxu0 0.0
    %2365 = vmatpush1.msra.mxu0 %v166
    %2366 = vmatprep.subr.mxu0 0.0
    %2367 = vmatpush1.msra.mxu0 %v167
    %2368 = vmatprep.subr.mxu0 0.0
    %2369 = vmatpush1.msra.mxu0 %v168
    %2370 = vmatprep.subr.mxu0 0.0
    %2371 = vmatpush1.msra.mxu0 %v169
    %2372 = vmatprep.subr.mxu0 0.0
    %2373 = vmatpush1.msra.mxu0 %v170
    %2374 = vmatprep.subr.mxu0 0.0
    %2375 = vmatpush1.msra.mxu0 %v171
    %2376 = vmatprep.subr.mxu0 0.0
    %2377 = vmatpush1.msra.mxu0 %v172
    %2378 = vmatprep.subr.mxu0 0.0
    %2379 = vmatpush1.msra.mxu0 %v173
    %2380 = vmatprep.subr.mxu0 0.0
    %2381 = vmatpush1.msra.mxu0 %v174
    %2382 = vmatprep.subr.mxu0 0.0
    %2383 = vmatpush1.msra.mxu0 %v175
    %2384 = vmatprep.subr.mxu0 0.0
    %2385 = vmatpush1.msra.mxu0 %v176
    %2386 = vmatprep.subr.mxu0 0.0
    %2387 = vmatpush1.msra.mxu0 %v177
    %2388 = vmatprep.subr.mxu0 0.0
    %2389 = vmatpush1.msra.mxu0 %v178
    %2390 = vmatprep.subr.mxu0 0.0
    %2391 = vmatpush1.msra.mxu0 %v179
    %2392 = vmatprep.subr.mxu0 0.0
    %2393 = vmatpush1.msra.mxu0 %v180
    %2394 = vmatprep.subr.mxu0 0.0
    %2395 = vmatpush1.msra.mxu0 %v181
    %2396 = vmatprep.subr.mxu0 0.0
    %2397 = vmatpush1.msra.mxu0 %v182
    %2398 = vmatprep.subr.mxu0 0.0
    %2399 = vmatpush1.msra.mxu0 %v183
    %2400 = vmatprep.subr.mxu0 0.0
    %2401 = vmatpush1.msra.mxu0 %v184
    %2402 = vmatprep.mubr.f32.mxu0 %v2133
    %2403 = vmatmul.mubr.f32.gmra.mrb[0].mxu0 %v2337
    %v2404 = vpop.f32.mrb[0].mxu0
    %v2405 = vadd.f32 %v197, %v2404
    %v2406 = vpop.f32.mrb[0].mxu0
    %2407 = vdwg.mxu0
    %v2408 = vmax.f32 %v2405, 0.0
    %2409 = vst [vmem:[#allocation2] sm:$0xff] %v2265
    %2410 = vst [vmem:[#allocation3] sm:$0xff] %v2337
    %2411 = vst [vmem:[#allocation4] sm:$0xff] %v2408
    // Predicated region
    $region58: #{tpu_custom_call.1} parent=1 // pred_check
      %p2412 = pneg %p98
    $region59: #{tpu_custom_call.1} parent=1 // pred_check_branch
      %2414 = sbr.rel (%p2412) target = $region61
    $region60: #{tpu_custom_call.1} parent=1 // pred_region
      %v2415 = vld [vmem:[#allocation13] sm:$0xff]
      %v2416 = vld [vmem:[#allocation13 + $0x8] sm:$0xff]
      %v2417 = vld [vmem:[#allocation13 + $0x10] sm:$0xff]
      %v2418 = vld [vmem:[#allocation13 + $0x18] sm:$0xff]
      %v2419 = vld [vmem:[#allocation13 + $0x20] sm:$0xff]
      %v2420 = vld [vmem:[#allocation13 + $0x28] sm:$0xff]
      %v2421 = vld [vmem:[#allocation13 + $0x30] sm:$0xff]
      %v2422 = vld [vmem:[#allocation13 + $0x38] sm:$0xff]
      %v2423 = vld [vmem:[#allocation13 + $0x40] sm:$0xff]
      %v2424 = vld [vmem:[#allocation13 + $0x48] sm:$0xff]
      %v2425 = vld [vmem:[#allocation13 + $0x50] sm:$0xff]
      %v2426 = vld [vmem:[#allocation13 + $0x58] sm:$0xff]
      %v2427 = vld [vmem:[#allocation13 + $0x60] sm:$0xff]
      %v2428 = vld [vmem:[#allocation13 + $0x68] sm:$0xff]
      %v2429 = vld [vmem:[#allocation13 + $0x70] sm:$0xff]
      %v2430 = vld [vmem:[#allocation13 + $0x78] sm:$0xff]
      %v2431 = vld [vmem:[%s7] sm:$0x1]
      %v2433 = vlaneseq
      %v2434 = vshrl.u32 %v2433, 7
      %v2435 = vsub.s32 0, %v2434
      %v2436 = vrot.slane %v2431, %v2435
      %2438 = vmatprep.subr.mxu0 0.0
      %2439 = vmatpush1.msra.mxu0 %v2415
      %2440 = vmatprep.subr.mxu0 0.0
      %2441 = vmatpush1.msra.mxu0 %v2416
      %2442 = vmatprep.subr.mxu0 0.0
      %2443 = vmatpush1.msra.mxu0 %v2417
      %2444 = vmatprep.subr.mxu0 0.0
      %2445 = vmatpush1.msra.mxu0 %v2418
      %2446 = vmatprep.subr.mxu0 0.0
      %2447 = vmatpush1.msra.mxu0 %v2419
      %2448 = vmatprep.subr.mxu0 0.0
      %2449 = vmatpush1.msra.mxu0 %v2420
      %2450 = vmatprep.subr.mxu0 0.0
      %2451 = vmatpush1.msra.mxu0 %v2421
      %2452 = vmatprep.subr.mxu0 0.0
      %2453 = vmatpush1.msra.mxu0 %v2422
      %2454 = vmatprep.subr.mxu0 0.0
      %2455 = vmatpush1.msra.mxu0 %v2423
      %2456 = vmatprep.subr.mxu0 0.0
      %2457 = vmatpush1.msra.mxu0 %v2424
      %2458 = vmatprep.subr.mxu0 0.0
      %2459 = vmatpush1.msra.mxu0 %v2425
      %2460 = vmatprep.subr.mxu0 0.0
      %2461 = vmatpush1.msra.mxu0 %v2426
      %2462 = vmatprep.subr.mxu0 0.0
      %2463 = vmatpush1.msra.mxu0 %v2427
      %2464 = vmatprep.subr.mxu0 0.0
      %2465 = vmatpush1.msra.mxu0 %v2428
      %2466 = vmatprep.subr.mxu0 0.0
      %2467 = vmatpush1.msra.mxu0 %v2429
      %2468 = vmatprep.subr.mxu0 0.0
      %2469 = vmatpush1.msra.mxu0 %v2430
      %2470 = vmatprep.subr.mxu0 0.0
      %2471 = vmatpush1.msra.mxu0 0.0
      %2472 = vmatprep.subr.mxu0 0.0
      %2473 = vmatpush1.msra.mxu0 0.0
      %2474 = vmatprep.subr.mxu0 0.0
      %2475 = vmatpush1.msra.mxu0 0.0
      %2476 = vmatprep.subr.mxu0 0.0
      %2477 = vmatpush1.msra.mxu0 0.0
      %2478 = vmatprep.subr.mxu0 0.0
      %2479 = vmatpush1.msra.mxu0 0.0
      %2480 = vmatprep.subr.mxu0 0.0
      %2481 = vmatpush1.msra.mxu0 0.0
      %2482 = vmatprep.subr.mxu0 0.0
      %2483 = vmatpush1.msra.mxu0 0.0
      %2484 = vmatprep.subr.mxu0 0.0
      %2485 = vmatpush1.msra.mxu0 0.0
      %2486 = vmatprep.subr.mxu0 0.0
      %2487 = vmatpush1.msra.mxu0 0.0
      %2488 = vmatprep.subr.mxu0 0.0
      %2489 = vmatpush1.msra.mxu0 0.0
      %2490 = vmatprep.subr.mxu0 0.0
      %2491 = vmatpush1.msra.mxu0 0.0
      %2492 = vmatprep.subr.mxu0 0.0
      %2493 = vmatpush1.msra.mxu0 0.0
      %2494 = vmatprep.subr.mxu0 0.0
      %2495 = vmatpush1.msra.mxu0 0.0
      %2496 = vmatprep.subr.mxu0 0.0
      %2497 = vmatpush1.msra.mxu0 0.0
      %2498 = vmatprep.subr.mxu0 0.0
      %2499 = vmatpush1.msra.mxu0 0.0
      %2500 = vmatprep.subr.mxu0 0.0
      %2501 = vmatpush1.msra.mxu0 0.0
      %2502 = vmatprep.mubr.f32.mxu0 0.0
      %2503 = vmatmul.mubr.f32.gmra.mrb[0].mxu0 %v2408
      %v2504 = vpop.f32.mrb[0].mxu0
      %v2505 = vadd.f32 %v2436, %v2504
      %v2506 = vpop.f32.mrb[0].mxu0
      %2507 = vdwg.mxu0
      %2508 = vst [vmem:[#allocation14] sm:$0xff] %v2505
    $region61: #{tpu_custom_call.1} parent=1 // pred_fallthru
      _
    // Predicated region
    $region62: #{tpu_custom_call.1} parent=1 // pred_check
      _
    $region63: #{tpu_custom_call.1} parent=1 // pred_check_branch
      %2510 = sbr.rel (0) target = $region65
    $region64: #{tpu_custom_call.1} parent=1 // pred_region
      %s2512 = ssub.s32 128, 128
      %2513 = vsyncadd [#allocation7], %s2512
      %s2515 = sshll.u32 [#allocation14], 4
      %s2516 = int_to_ptr.vmem [resolvable:$true] %s2515
      %2518 = dma.vmem_to_hbm [thread:$0]  %s2516, 128, %s8, [#allocation7]
    $region65: #{tpu_custom_call.1} parent=1 // pred_fallthru
      _
    // Predicated region
    $region66: #{tpu_custom_call.1} parent=1 // pred_check
      _
    $region67: #{tpu_custom_call.1} parent=1 // pred_check_branch
      %2520 = sbr.rel (0) target = $region69
    $region68: #{tpu_custom_call.1} parent=1 // pred_region
      %2521 = dma.done [#allocation7], 128
    $region69: #{tpu_custom_call.1} parent=1 // pred_fallthru
      _
    %2522 = vsyncpa [#allocation6], 1
    %2523 = vsyncpa [#allocation9], 1
    %2524 = vsyncpa [#allocation12], 1
    %2525 = vsyncpa [#allocation7], 1

</llo_original>
